<compile_context>
chip_gen: v7x
topology: tpu7x:2x2x1
jax: 0.10.0
libtpu: 0.0.40
codegen_flags: <defaults>
</compile_context>

<pallas_src>
import math

import numpy as np
import jax
import jax.numpy as jnp
from jax.experimental import pallas as pl
from jax.experimental.pallas import tpu as pltpu


# ------------------------------ Pallas kernel ------------------------------ #
def _deep_retina_kernel(p1_ref, w1_ref, b1_ref, w2_ref, gseg_ref, b2_ref,
                        wl_ref, bl_ref, o_ref):
    # conv1 for this sample as one im2col matmul (bf16 x bf16 -> f32 acc) + bias
    # + ReLU.  w1_ref is the (C*225, 16) conv1 matrix replicated 8x along lanes,
    # so lane (co*16 + ci) of y1 carries conv1 channel ci (one replica per conv2
    # output channel co).
    y1 = jnp.dot(p1_ref[0], w1_ref[...], preferred_element_type=jnp.float32)
    y1 = jnp.maximum(y1 + b1_ref[...], 0.0)                     # (81, 128) f32

    # conv2 (9x9 VALID over the 9x9 conv1 map -> 1x1 output) == full contraction
    # over (position, cin): elementwise product with the per-position conv2
    # weight slab, sublane-reduce over the 81 positions, then an exact 0/1
    # segment-sum matmul over each 16-lane group.
    prod = y1 * w2_ref[...]                                     # (81, 128) f32
    per_lane = jnp.sum(prod, axis=0, keepdims=True)             # (1, 128) f32
    y2 = jnp.dot(per_lane, gseg_ref[...],
                 preferred_element_type=jnp.float32)            # (1, 8) f32
    y2 = jnp.maximum(y2 + b2_ref[...], 0.0)

    # flatten (1x1 spatial -> identity) + Linear + Softplus(beta=1, threshold=20)
    z = jnp.dot(y2.astype(jnp.bfloat16), wl_ref[...],
                preferred_element_type=jnp.float32) + bl_ref[...]
    o_ref[0] = jnp.where(z > 20.0, z,
                         jnp.log(1.0 + jnp.exp(jnp.minimum(z, 20.0))))


# ------------------------------ wrapper (JAX) ------------------------------ #
def deep_retina_forward(x, params):
    """x: (N, C, H, W) float32, NCHW (PyTorch convention)."""
    N, C, H, W = x.shape
    H1, W1 = H - 15 + 1, W - 15 + 1
    assert H1 == 9 and W1 == 9, (
        "DeepRetina2016 is only shape-consistent when conv1 output is 9x9 "
        "(so conv2 output is 1x1)")
    P = H1 * W1                                   # 81 conv1-map positions
    KK = C * 15 * 15                              # im2col feature length
    out_n = params["wl"].shape[0]

    # ---- XLA glue: one patches op + tiny weight re-layouts (no padding) ----
    # Patch feature order is (cin, kh, kw) == torch's w1.reshape(16, -1) order.
    p1 = jax.lax.conv_general_dilated_patches(
        x, filter_shape=(15, 15), window_strides=(1, 1), padding="VALID",
        dimension_numbers=("NCHW", "OIHW", "NHWC"))             # (N, 9, 9, C*225)
    p1 = p1.reshape(N, P, KK).astype(jnp.bfloat16)              # rows = (h1, w1)

    w1m = params["w1"].reshape(16, -1).T                        # (C*225, 16)
    w1wide = jnp.tile(w1m, (1, 8)).astype(jnp.bfloat16)         # (C*225, 128)
    b1wide = jnp.tile(params["b1"], 8).reshape(1, 128)          # (1, 128) f32

    # conv2 weights per conv1-map position: [p, co*16 + ci] = w2[co, ci, ph, pw]
    w2slab = jnp.transpose(params["w2"], (2, 3, 0, 1)).reshape(P, 128)  # f32
    b2 = params["b2"].reshape(1, 8)

    wlT = params["wl"].T.astype(jnp.bfloat16)                   # (8, out_n)
    bl = params["bl"].reshape(1, out_n)

    # Exact 0/1 segment-sum matrix (compile-time constant).
    gseg = np.repeat(np.eye(8, dtype=np.float32), 16, axis=0)   # (128, 8)

    out = pl.pallas_call(
        _deep_retina_kernel,
        out_shape=jax.ShapeDtypeStruct((N, 1, out_n), jnp.float32),
        grid=(N,),
        in_specs=[
            pl.BlockSpec((1, P, KK), lambda n: (n, 0, 0)),   # per-sample patches
            pl.BlockSpec((KK, 128), lambda n: (0, 0)),       # conv1 weights (wide)
            pl.BlockSpec((1, 128), lambda n: (0, 0)),        # conv1 bias (wide)
            pl.BlockSpec((P, 128), lambda n: (0, 0)),        # conv2 weight slab
            pl.BlockSpec((128, 8), lambda n: (0, 0)),        # 16-lane segment sum
            pl.BlockSpec((1, 8), lambda n: (0, 0)),          # conv2 bias
            pl.BlockSpec((8, out_n), lambda n: (0, 0)),      # linear weight^T
            pl.BlockSpec((1, out_n), lambda n: (0, 0)),      # linear bias
        ],
        out_specs=pl.BlockSpec((1, 1, out_n), lambda n: (n, 0, 0)),
        compiler_params=pltpu.CompilerParams(
            dimension_semantics=("parallel",)),
    )(p1, w1wide, b1wide, w2slab, gseg, b2, wlT, bl)
    return out.reshape(N, out_n)


# --------------------------- params / reference ---------------------------- #
def init_params(key, in_len, in_n, out_n):
    """Deterministic init mimicking PyTorch's default U(-1/sqrt(fan_in), ...)."""
    ks = jax.random.split(key, 6)

    def uni(k, shape, fan_in):
        bound = 1.0 / math.sqrt(fan_in)
        return jax.random.uniform(k, shape, jnp.float32, -bound, bound)

    lin_in = in_len - 15 + 1 - 9 + 1
    return {
        "w1": uni(ks[0], (16, in_n, 15, 15), in_n * 15 * 15),
        "b1": uni(ks[1], (16,), in_n * 15 * 15),
        "w2": uni(ks[2], (8, 16, 9, 9), 16 * 9 * 9),
        "b2": uni(ks[3], (8,), 16 * 9 * 9),
        "wl": uni(ks[4], (out_n, lin_in), lin_in),
        "bl": uni(ks[5], (out_n,), lin_in),
    }


def reference_forward(x, params):
    dn = ("NCHW", "OIHW", "NCHW")
    y = jax.lax.conv_general_dilated(x, params["w1"], (1, 1), "VALID",
                                     dimension_numbers=dn)
    y = jax.nn.relu(y + params["b1"][None, :, None, None])
    y = jax.lax.conv_general_dilated(y, params["w2"], (1, 1), "VALID",
                                     dimension_numbers=dn)
    y = jax.nn.relu(y + params["b2"][None, :, None, None])
    y = y.reshape(y.shape[0], -1)
    y = y @ params["wl"].T + params["bl"]
    return jnp.where(y > 20.0, y, jnp.log1p(jnp.exp(jnp.minimum(y, 20.0))))


if __name__ == "__main__":
    # Shapes consistent with the module: input (N=2, C=in_n=4, 23, 23);
    # conv1 -> 9x9x16, conv2 -> 1x1x8, flatten = 8 == in_len - 22 => in_len = 30.
    in_n, out_n, in_len = 4, 6, 30
    H = W = 23

    key = jax.random.PRNGKey(0)
    kx, kp = jax.random.split(key)
    x = jax.random.normal(kx, (2, in_n, H, W), jnp.float32)
    params = init_params(kp, in_len, in_n, out_n)

    out = jax.jit(deep_retina_forward)(x, params)
    out = jax.block_until_ready(out)

    ref = reference_forward(x, params)
    assert out.shape == (2, out_n)
    # bf16 MXU inputs (f32 accumulation) -> slightly looser tolerance than pure f32.
    assert jnp.allclose(out, ref, atol=1e-2, rtol=1e-2), "mismatch vs JAX reference"

    print("KERNEL_OK")
</pallas_src>

<mosaic_0001>
module attributes {stable_mosaic.version = 11 : i64} {
  func.func @_deep_retina_kernel(%arg0: i32, %arg1: memref<1x81x900xbf16, #tpu.memory_space<vmem>>, %arg2: memref<900x128xbf16, #tpu.memory_space<vmem>>, %arg3: memref<1x128xf32, #tpu.memory_space<vmem>>, %arg4: memref<81x128xf32, #tpu.memory_space<vmem>>, %arg5: memref<128x8xf32, #tpu.memory_space<vmem>>, %arg6: memref<1x8xf32, #tpu.memory_space<vmem>>, %arg7: memref<8x6xbf16, #tpu.memory_space<vmem>>, %arg8: memref<1x6xf32, #tpu.memory_space<vmem>>, %arg9: memref<1x1x6xf32, #tpu.memory_space<vmem>>) attributes {dimension_semantics = [#tpu.dimension_semantics<parallel>], iteration_bounds = array<i64: 2>, scalar_prefetch = 0 : i64, scratch_operands = 0 : i64, tpu.core_type = #tpu.core_type<tc>, window_params = [{transform_indices = @transform_0, window_bounds = array<i64: 1, 81, 900>}, {pipeline_mode = #tpu.pipeline_mode<synchronous>, transform_indices = @transform_1, window_bounds = array<i64: 900, 128>}, {pipeline_mode = #tpu.pipeline_mode<synchronous>, transform_indices = @transform_2, window_bounds = array<i64: 1, 128>}, {pipeline_mode = #tpu.pipeline_mode<synchronous>, transform_indices = @transform_3, window_bounds = array<i64: 81, 128>}, {pipeline_mode = #tpu.pipeline_mode<synchronous>, transform_indices = @transform_4, window_bounds = array<i64: 128, 8>}, {pipeline_mode = #tpu.pipeline_mode<synchronous>, transform_indices = @transform_5, window_bounds = array<i64: 1, 8>}, {pipeline_mode = #tpu.pipeline_mode<synchronous>, transform_indices = @transform_6, window_bounds = array<i64: 8, 6>}, {pipeline_mode = #tpu.pipeline_mode<synchronous>, transform_indices = @transform_7, window_bounds = array<i64: 1, 6>}, {transform_indices = @transform_8, window_bounds = array<i64: 1, 1, 6>}]} {
    %c0 = arith.constant 0 : index
    %c0_0 = arith.constant 0 : index
    %c0_1 = arith.constant 0 : index
    %0 = vector.load %arg1[%c0, %c0_0, %c0_1] : memref<1x81x900xbf16, #tpu.memory_space<vmem>>, vector<1x81x900xbf16>
    %1 = vector.shape_cast %0 : vector<1x81x900xbf16> to vector<81x900xbf16>
    %c0_2 = arith.constant 0 : index
    %c0_3 = arith.constant 0 : index
    %2 = vector.load %arg2[%c0_2, %c0_3] : memref<900x128xbf16, #tpu.memory_space<vmem>>, vector<900x128xbf16>
    %cst = arith.constant dense<0.000000e+00> : vector<81x128xf32>
    %3 = tpu.matmul %1, %2, %cst {dimension_numbers = #tpu.dot_dimension_numbers<[1], [0], [0], [1], [0, 0, 1, 1], [], []>} : vector<81x900xbf16>, vector<900x128xbf16>, vector<81x128xf32> -> vector<81x128xf32>
    %c0_4 = arith.constant 0 : index
    %c0_5 = arith.constant 0 : index
    %4 = vector.load %arg3[%c0_4, %c0_5] : memref<1x128xf32, #tpu.memory_space<vmem>>, vector<1x128xf32>
    %5 = vector.broadcast %4 : vector<1x128xf32> to vector<81x128xf32>
    %6 = arith.addf %3, %5 : vector<81x128xf32>
    %cst_6 = arith.constant 0.000000e+00 : f32
    %7 = vector.broadcast %cst_6 : f32 to vector<81x128xf32>
    %8 = arith.maximumf %6, %7 : vector<81x128xf32>
    %c0_7 = arith.constant 0 : index
    %c0_8 = arith.constant 0 : index
    %9 = vector.load %arg4[%c0_7, %c0_8] : memref<81x128xf32, #tpu.memory_space<vmem>>, vector<81x128xf32>
    %10 = arith.mulf %8, %9 : vector<81x128xf32>
    %cst_9 = arith.constant dense<0.000000e+00> : vector<128xf32>
    %11 = vector.multi_reduction <add>, %10, %cst_9 [0] : vector<81x128xf32> to vector<128xf32>
    %12 = vector.shape_cast %11 : vector<128xf32> to vector<1x128xf32>
    %c0_10 = arith.constant 0 : index
    %c0_11 = arith.constant 0 : index
    %13 = vector.load %arg5[%c0_10, %c0_11] : memref<128x8xf32, #tpu.memory_space<vmem>>, vector<128x8xf32>
    %cst_12 = arith.constant dense<0.000000e+00> : vector<1x8xf32>
    %14 = tpu.matmul %12, %13, %cst_12 {dimension_numbers = #tpu.dot_dimension_numbers<[1], [0], [0], [1], [0, 0, 1, 1], [], []>} : vector<1x128xf32>, vector<128x8xf32>, vector<1x8xf32> -> vector<1x8xf32>
    %c0_13 = arith.constant 0 : index
    %c0_14 = arith.constant 0 : index
    %15 = vector.load %arg6[%c0_13, %c0_14] : memref<1x8xf32, #tpu.memory_space<vmem>>, vector<1x8xf32>
    %16 = arith.addf %14, %15 : vector<1x8xf32>
    %cst_15 = arith.constant 0.000000e+00 : f32
    %17 = vector.broadcast %cst_15 : f32 to vector<1x8xf32>
    %18 = arith.maximumf %16, %17 : vector<1x8xf32>
    %19 = arith.truncf %18 : vector<1x8xf32> to vector<1x8xbf16>
    %c0_16 = arith.constant 0 : index
    %c0_17 = arith.constant 0 : index
    %20 = vector.load %arg7[%c0_16, %c0_17] : memref<8x6xbf16, #tpu.memory_space<vmem>>, vector<8x6xbf16>
    %cst_18 = arith.constant dense<0.000000e+00> : vector<1x6xf32>
    %21 = tpu.matmul %19, %20, %cst_18 {dimension_numbers = #tpu.dot_dimension_numbers<[1], [0], [0], [1], [0, 0, 1, 1], [], []>} : vector<1x8xbf16>, vector<8x6xbf16>, vector<1x6xf32> -> vector<1x6xf32>
    %c0_19 = arith.constant 0 : index
    %c0_20 = arith.constant 0 : index
    %22 = vector.load %arg8[%c0_19, %c0_20] : memref<1x6xf32, #tpu.memory_space<vmem>>, vector<1x6xf32>
    %23 = arith.addf %21, %22 : vector<1x6xf32>
    %cst_21 = arith.constant 2.000000e+01 : f32
    %24 = vector.broadcast %cst_21 : f32 to vector<1x6xf32>
    %25 = arith.cmpf ogt, %23, %24 : vector<1x6xf32>
    %cst_22 = arith.constant 2.000000e+01 : f32
    %26 = vector.broadcast %cst_22 : f32 to vector<1x6xf32>
    %27 = arith.minimumf %23, %26 : vector<1x6xf32>
    %28 = math.exp %27 : vector<1x6xf32>
    %cst_23 = arith.constant 1.000000e+00 : f32
    %29 = vector.broadcast %cst_23 : f32 to vector<1x6xf32>
    %30 = arith.addf %29, %28 : vector<1x6xf32>
    %31 = math.log %30 : vector<1x6xf32>
    %32 = arith.select %25, %23, %31 : vector<1x6xi1>, vector<1x6xf32>
    %c0_24 = arith.constant 0 : index
    %c0_25 = arith.constant 0 : index
    %c0_26 = arith.constant 0 : index
    %33 = vector.load %arg9[%c0_24, %c0_25, %c0_26] : memref<1x1x6xf32, #tpu.memory_space<vmem>>, vector<1x1x6xf32>
    %34 = vector.shape_cast %33 : vector<1x1x6xf32> to vector<1x6xf32>
    %35 = vector.shape_cast %32 : vector<1x6xf32> to vector<1x1x6xf32>
    tpu.vector_store %arg9[%c0_24, %c0_25, %c0_26], %35 {strides = array<i32>} : memref<1x1x6xf32, #tpu.memory_space<vmem>>, vector<1x1x6xf32>,
    return
  }
  func.func @transform_0(%arg0: i32) -> (i32, i32, i32) {
    %c0_i32 = arith.constant 0 : i32
    %c0_i32_0 = arith.constant 0 : i32
    %c0_i32_1 = arith.constant 0 : i32
    return %arg0, %c0_i32, %c0_i32_0 : i32, i32, i32
  }
  func.func @transform_1(%arg0: i32) -> (i32, i32) {
    %c0_i32 = arith.constant 0 : i32
    %c0_i32_0 = arith.constant 0 : i32
    %c0_i32_1 = arith.constant 0 : i32
    return %c0_i32, %c0_i32_0 : i32, i32
  }
  func.func @transform_2(%arg0: i32) -> (i32, i32) {
    %c0_i32 = arith.constant 0 : i32
    %c0_i32_0 = arith.constant 0 : i32
    %c0_i32_1 = arith.constant 0 : i32
    return %c0_i32, %c0_i32_0 : i32, i32
  }
  func.func @transform_3(%arg0: i32) -> (i32, i32) {
    %c0_i32 = arith.constant 0 : i32
    %c0_i32_0 = arith.constant 0 : i32
    %c0_i32_1 = arith.constant 0 : i32
    return %c0_i32, %c0_i32_0 : i32, i32
  }
  func.func @transform_4(%arg0: i32) -> (i32, i32) {
    %c0_i32 = arith.constant 0 : i32
    %c0_i32_0 = arith.constant 0 : i32
    %c0_i32_1 = arith.constant 0 : i32
    return %c0_i32, %c0_i32_0 : i32, i32
  }
  func.func @transform_5(%arg0: i32) -> (i32, i32) {
    %c0_i32 = arith.constant 0 : i32
    %c0_i32_0 = arith.constant 0 : i32
    %c0_i32_1 = arith.constant 0 : i32
    return %c0_i32, %c0_i32_0 : i32, i32
  }
  func.func @transform_6(%arg0: i32) -> (i32, i32) {
    %c0_i32 = arith.constant 0 : i32
    %c0_i32_0 = arith.constant 0 : i32
    %c0_i32_1 = arith.constant 0 : i32
    return %c0_i32, %c0_i32_0 : i32, i32
  }
  func.func @transform_7(%arg0: i32) -> (i32, i32) {
    %c0_i32 = arith.constant 0 : i32
    %c0_i32_0 = arith.constant 0 : i32
    %c0_i32_1 = arith.constant 0 : i32
    return %c0_i32, %c0_i32_0 : i32, i32
  }
  func.func @transform_8(%arg0: i32) -> (i32, i32, i32) {
    %c0_i32 = arith.constant 0 : i32
    %c0_i32_0 = arith.constant 0 : i32
    %c0_i32_1 = arith.constant 0 : i32
    return %arg0, %c0_i32, %c0_i32_0 : i32, i32, i32
  }
}

</mosaic_0001>

<llo_original>
// kernel: tile.18
$region0: #{tile.18}
  #allocation0 [shape = 's32[1]{0}', space=sflag, size = 0x4, scoped, tag = 'scoped memory for tile.18']
  %s0 = inlined_call_operand.vmem [shape: f32[16], index: 0, kind: input, shape index: {}]
  %s1 = inlined_call_operand.vmem [shape: f32[8,16], index: 1, kind: output, shape index: {}]
  // Predicated region
  $region2: #{tile.18} parent=0 // pred_check
    _
  $region3: #{tile.18} parent=0 // pred_check_branch
    %3 = sbr.rel (0) target = $region5
  $region4: #{tile.18} parent=0 // pred_region
    _
  $region5: #{tile.18} parent=0 // pred_fallthru
    _
  %v4 = vld [vmem:[%s0] ss:$0 sm:$0xff]
  %5 = vst [vmem:[%s1] sm:$0xff] %v4

// kernel: tile.19
$region0: #{tile.19}
  %s0 = inlined_call_operand.vmem [shape: f32[8,16], index: 0, kind: input, shape index: {}]
  %s1 = inlined_call_operand.vmem [shape: f32[1,128], index: 1, kind: output, shape index: {}]
  $region1: #{tile.19} parent=0
    #allocation0 [shape = 'u8[4096]{0}', space=vmem, size = 0x1000, scoped, tag = 'scoped mem for output reshape']
    %v2 = vld [vmem:[%s0] sm:$0x1]
    %vm3 = vcmask 130048
    %4 = vst.msk [vmem:[#allocation0] sm:$0x1] %vm3, %v2
    %s5 = scalar_lea.vmem %s0, 7
    %v6 = vld [vmem:[%s5] sm:$0x1]
    %7 = vrot.lane.b32.xlu0 %v6, 112
    %v8 = vpop.permute.xlu0 %7
    %vm9 = vcmask 1048448
    %10 = vst.msk [vmem:[#allocation0] sm:$0x1] %vm9, %v8
    %s11 = scalar_lea.vmem %s0, 6
    %v12 = vld [vmem:[%s11] sm:$0x1]
    %13 = vrot.lane.b32.xlu0 %v12, 96
    %v14 = vpop.permute.xlu0 %13
    %vm15 = vcmask 917248
    %16 = vst.msk [vmem:[#allocation0] sm:$0x1] %vm15, %v14
    %s17 = scalar_lea.vmem %s0, 5
    %v18 = vld [vmem:[%s17] sm:$0x1]
    %19 = vrot.lane.b32.xlu0 %v18, 80
    %v20 = vpop.permute.xlu0 %19
    %vm21 = vcmask 786048
    %22 = vst.msk [vmem:[#allocation0] sm:$0x1] %vm21, %v20
    %s23 = scalar_lea.vmem %s0, 4
    %v24 = vld [vmem:[%s23] sm:$0x1]
    %25 = vrot.lane.b32.xlu0 %v24, 64
    %v26 = vpop.permute.xlu0 %25
    %vm27 = vcmask 654848
    %28 = vst.msk [vmem:[#allocation0] sm:$0x1] %vm27, %v26
    %s29 = scalar_lea.vmem %s0, 3
    %v30 = vld [vmem:[%s29] sm:$0x1]
    %31 = vrot.lane.b32.xlu0 %v30, 48
    %v32 = vpop.permute.xlu0 %31
    %vm33 = vcmask 523648
    %34 = vst.msk [vmem:[#allocation0] sm:$0x1] %vm33, %v32
    %s35 = scalar_lea.vmem %s0, 2
    %v36 = vld [vmem:[%s35] sm:$0x1]
    %37 = vrot.lane.b32.xlu0 %v36, 32
    %v38 = vpop.permute.xlu0 %37
    %vm39 = vcmask 392448
    %40 = vst.msk [vmem:[#allocation0] sm:$0x1] %vm39, %v38
    %s41 = scalar_lea.vmem %s0, 1
    %v42 = vld [vmem:[%s41] sm:$0x1]
    %43 = vrot.lane.b32.xlu0 %v42, 16
    %v44 = vpop.permute.xlu0 %43
    %vm45 = vcmask 261248
    %46 = vst.msk [vmem:[#allocation0] sm:$0x1] %vm45, %v44
    %s48 = sshllo.u32 0, 1
    %v50 = vld [vmem:[#allocation0] sm:%s48]
    %s51 = sshllo.u32 0, 1
    %52 = vst [vmem:[%s1] sm:%s51] %v50

// kernel: deep_retina_forward.1
$region0: #{deep_retina_forward.1}
  #allocation0 [shape = 'u32[]', space=smem, size = 0x4, offset = 0x4, fixed_abs, tag = 'smem constant byte address 0x4 - core index']
  #allocation1 [shape = 'u32[144,128]{1,0:T(1,128)}', space=vmem, size = 0x12000, scoped, tag = 'internal scratch']
  %s0 = inlined_call_operand.vmem [shape: bf16[2,81,900], index: 0, kind: input, shape index: {}]
  %s1 = inlined_call_operand.vmem [shape: bf16[900,128], index: 1, kind: input, shape index: {}]
  %s2 = inlined_call_operand.vmem [shape: f32[1,128], index: 2, kind: input, shape index: {}]
  %s3 = inlined_call_operand.vmem [shape: f32[81,128], index: 3, kind: input, shape index: {}]
  %s4 = inlined_call_operand.vmem [shape: f32[128,8], index: 4, kind: input, shape index: {}]
  %s5 = inlined_call_operand.vmem [shape: f32[1,8], index: 5, kind: input, shape index: {}]
  %s6 = inlined_call_operand.vmem [shape: bf16[8,6], index: 6, kind: input, shape index: {}]
  %s7 = inlined_call_operand.vmem [shape: f32[1,6], index: 7, kind: input, shape index: {}]
  %s8 = inlined_call_operand.hbm [shape: f32[2,1,6], index: 8, kind: output, shape index: {}]
  %s9 = sld [smem:[#allocation0]]
  $region65: #{deep_retina_forward.1} parent=0
    _
  %s11 = ssub.s32 1, %s9
  %s12 = scalar_select 0, %s11, %s9
  $region1: #{deep_retina_forward.1} parent=0
    #allocation2 [shape = 'u8[1024]{0}', space=vmem, size = 0x400, scoped, tag = 'output window, operand 0']
    #allocation3 [shape = 's32[2]{0}', space=sflag, size = 0x8, scoped, tag = 'scoped memory for deep_retina_forward.1']
    %13 = vsyncpa [#allocation3], 0
    %s14 = scalar_lea.sflag [#allocation3], 1
    %15 = vsyncpa %s14, 0
    loop: start=0, step=1, limit=4
    $region2: #{deep_retina_forward.1} parent=1 // loop_pre_header
      _
    $region3: #{deep_retina_forward.1} parent=1 // loop_header
      %s17 = sphi 0, %s21
      %p18 = scmp.ge.s32.totalorder %s17, 4
      %s27 = sphi 0, %s29
      %s30 = sphi 0, %s27
      %s31 = sphi 0, %s30
      %s47 = sphi 0, %s31
      %s51 = sphi 0, %s51
      %s53 = sphi 0, %s51
      %s54 = sphi 0, %s53
      %s68 = sphi 0, %s54
      %s72 = sphi 0, %s72
      %s74 = sphi 0, %s72
      %s75 = sphi 0, %s74
      %s89 = sphi 0, %s75
      %s93 = sphi 0, %s93
      %s95 = sphi 0, %s93
      %s96 = sphi 0, %s95
      %s110 = sphi 0, %s96
      %s114 = sphi 0, %s114
      %s116 = sphi 0, %s114
      %s117 = sphi 0, %s116
      %s131 = sphi 0, %s117
      %s135 = sphi 0, %s135
      %s137 = sphi 0, %s135
      %s138 = sphi 0, %s137
      %s152 = sphi 0, %s138
      %s156 = sphi 0, %s156
      %s158 = sphi 0, %s156
      %s159 = sphi 0, %s158
      %s173 = sphi 0, %s159
      %s177 = sphi 0, %s177
      %s179 = sphi 0, %s177
      %s180 = sphi 0, %s179
      %s194 = sphi 0, %s180
      %s200 = sphi 0, %s202
      %s203 = sphi 0, %s200
      %s204 = sphi 0, %s203
      %s220 = sphi 0, %s204
    $region4: #{deep_retina_forward.1} parent=1 // loop_header_branch
      %20 = sbr.rel (%p18) target = $region8
    $region5: #{deep_retina_forward.1} parent=1 // loop_body
      %s22 = ssub.s32 %s17, 1
      %s23 = ssub.s32 %s17, 2
      %s24 = sadd.s32 %s17, 1
      %s25 = ssub.s32 %s17, %s24
      %p26 = scmp.eq.s32.totalorder %s25, 0
      %s28 = sadd.s32 %s27, 1
      %s29 = scalar_select %p26, %s27, %s28
      %p32 = pneg %p26
      %p33 = scmp.eq.s32.totalorder %s17, 1
      %p34 = por %p32, %p33
      %p35 = scmp.ne.s32.totalorder %s27, %s30
      %p36 = scmp.eq.s32.totalorder %s17, 0
      %p37 = por %p35, %p36
      %p38 = scmp.ne.s32.totalorder %s27, %s30
      %p39 = scmp.eq.s32.totalorder %s22, 1
      %p40 = por %p38, %p39
      %p41 = scmp.ne.s32.totalorder %s30, %s31
      %p42 = scmp.eq.s32.totalorder %s22, 0
      %p43 = por %p41, %p42
      %p44 = scmp.ne.s32.totalorder %s30, %s31
      %p45 = scmp.eq.s32.totalorder %s23, 1
      %p46 = por %p44, %p45
      %p48 = scmp.ne.s32.totalorder %s31, %s47
      %p49 = scmp.eq.s32.totalorder %s23, 0
      %p50 = por %p48, %p49
      %s52 = sadd.s32 %s51, 1
      %p55 = scmp.eq.s32.totalorder %s17, 1
      %p56 = scmp.ne.s32.totalorder %s51, %s53
      %p57 = scmp.eq.s32.totalorder %s17, 0
      %p58 = por %p56, %p57
      %p59 = scmp.ne.s32.totalorder %s51, %s53
      %p60 = scmp.eq.s32.totalorder %s22, 1
      %p61 = por %p59, %p60
      %p62 = scmp.ne.s32.totalorder %s53, %s54
      %p63 = scmp.eq.s32.totalorder %s22, 0
      %p64 = por %p62, %p63
      %p65 = scmp.ne.s32.totalorder %s53, %s54
      %p66 = scmp.eq.s32.totalorder %s23, 1
      %p67 = por %p65, %p66
      %p69 = scmp.ne.s32.totalorder %s54, %s68
      %p70 = scmp.eq.s32.totalorder %s23, 0
      %p71 = por %p69, %p70
      %s73 = sadd.s32 %s72, 1
      %p76 = scmp.eq.s32.totalorder %s17, 1
      %p77 = scmp.ne.s32.totalorder %s72, %s74
      %p78 = scmp.eq.s32.totalorder %s17, 0
      %p79 = por %p77, %p78
      %p80 = scmp.ne.s32.totalorder %s72, %s74
      %p81 = scmp.eq.s32.totalorder %s22, 1
      %p82 = por %p80, %p81
      %p83 = scmp.ne.s32.totalorder %s74, %s75
      %p84 = scmp.eq.s32.totalorder %s22, 0
      %p85 = por %p83, %p84
      %p86 = scmp.ne.s32.totalorder %s74, %s75
      %p87 = scmp.eq.s32.totalorder %s23, 1
      %p88 = por %p86, %p87
      %p90 = scmp.ne.s32.totalorder %s75, %s89
      %p91 = scmp.eq.s32.totalorder %s23, 0
      %p92 = por %p90, %p91
      %s94 = sadd.s32 %s93, 1
      %p97 = scmp.eq.s32.totalorder %s17, 1
      %p98 = scmp.ne.s32.totalorder %s93, %s95
      %p99 = scmp.eq.s32.totalorder %s17, 0
      %p100 = por %p98, %p99
      %p101 = scmp.ne.s32.totalorder %s93, %s95
      %p102 = scmp.eq.s32.totalorder %s22, 1
      %p103 = por %p101, %p102
      %p104 = scmp.ne.s32.totalorder %s95, %s96
      %p105 = scmp.eq.s32.totalorder %s22, 0
      %p106 = por %p104, %p105
      %p107 = scmp.ne.s32.totalorder %s95, %s96
      %p108 = scmp.eq.s32.totalorder %s23, 1
      %p109 = por %p107, %p108
      %p111 = scmp.ne.s32.totalorder %s96, %s110
      %p112 = scmp.eq.s32.totalorder %s23, 0
      %p113 = por %p111, %p112
      %s115 = sadd.s32 %s114, 1
      %p118 = scmp.eq.s32.totalorder %s17, 1
      %p119 = scmp.ne.s32.totalorder %s114, %s116
      %p120 = scmp.eq.s32.totalorder %s17, 0
      %p121 = por %p119, %p120
      %p122 = scmp.ne.s32.totalorder %s114, %s116
      %p123 = scmp.eq.s32.totalorder %s22, 1
      %p124 = por %p122, %p123
      %p125 = scmp.ne.s32.totalorder %s116, %s117
      %p126 = scmp.eq.s32.totalorder %s22, 0
      %p127 = por %p125, %p126
      %p128 = scmp.ne.s32.totalorder %s116, %s117
      %p129 = scmp.eq.s32.totalorder %s23, 1
      %p130 = por %p128, %p129
      %p132 = scmp.ne.s32.totalorder %s117, %s131
      %p133 = scmp.eq.s32.totalorder %s23, 0
      %p134 = por %p132, %p133
      %s136 = sadd.s32 %s135, 1
      %p139 = scmp.eq.s32.totalorder %s17, 1
      %p140 = scmp.ne.s32.totalorder %s135, %s137
      %p141 = scmp.eq.s32.totalorder %s17, 0
      %p142 = por %p140, %p141
      %p143 = scmp.ne.s32.totalorder %s135, %s137
      %p144 = scmp.eq.s32.totalorder %s22, 1
      %p145 = por %p143, %p144
      %p146 = scmp.ne.s32.totalorder %s137, %s138
      %p147 = scmp.eq.s32.totalorder %s22, 0
      %p148 = por %p146, %p147
      %p149 = scmp.ne.s32.totalorder %s137, %s138
      %p150 = scmp.eq.s32.totalorder %s23, 1
      %p151 = por %p149, %p150
      %p153 = scmp.ne.s32.totalorder %s138, %s152
      %p154 = scmp.eq.s32.totalorder %s23, 0
      %p155 = por %p153, %p154
      %s157 = sadd.s32 %s156, 1
      %p160 = scmp.eq.s32.totalorder %s17, 1
      %p161 = scmp.ne.s32.totalorder %s156, %s158
      %p162 = scmp.eq.s32.totalorder %s17, 0
      %p163 = por %p161, %p162
      %p164 = scmp.ne.s32.totalorder %s156, %s158
      %p165 = scmp.eq.s32.totalorder %s22, 1
      %p166 = por %p164, %p165
      %p167 = scmp.ne.s32.totalorder %s158, %s159
      %p168 = scmp.eq.s32.totalorder %s22, 0
      %p169 = por %p167, %p168
      %p170 = scmp.ne.s32.totalorder %s158, %s159
      %p171 = scmp.eq.s32.totalorder %s23, 1
      %p172 = por %p170, %p171
      %p174 = scmp.ne.s32.totalorder %s159, %s173
      %p175 = scmp.eq.s32.totalorder %s23, 0
      %p176 = por %p174, %p175
      %s178 = sadd.s32 %s177, 1
      %p181 = scmp.eq.s32.totalorder %s17, 1
      %p182 = scmp.ne.s32.totalorder %s177, %s179
      %p183 = scmp.eq.s32.totalorder %s17, 0
      %p184 = por %p182, %p183
      %p185 = scmp.ne.s32.totalorder %s177, %s179
      %p186 = scmp.eq.s32.totalorder %s22, 1
      %p187 = por %p185, %p186
      %p188 = scmp.ne.s32.totalorder %s179, %s180
      %p189 = scmp.eq.s32.totalorder %s22, 0
      %p190 = por %p188, %p189
      %p191 = scmp.ne.s32.totalorder %s179, %s180
      %p192 = scmp.eq.s32.totalorder %s23, 1
      %p193 = por %p191, %p192
      %p195 = scmp.ne.s32.totalorder %s180, %s194
      %p196 = scmp.eq.s32.totalorder %s23, 0
      %p197 = por %p195, %p196
      %s198 = ssub.s32 %s17, %s24
      %p199 = scmp.eq.s32.totalorder %s198, 0
      %s201 = sadd.s32 %s200, 1
      %s202 = scalar_select %p199, %s200, %s201
      %p205 = pneg %p199
      %p206 = scmp.eq.s32.totalorder %s17, 1
      %p207 = por %p205, %p206
      %p208 = scmp.ne.s32.totalorder %s200, %s203
      %p209 = scmp.eq.s32.totalorder %s17, 0
      %p210 = por %p208, %p209
      %p211 = scmp.ne.s32.totalorder %s200, %s203
      %p212 = scmp.eq.s32.totalorder %s22, 1
      %p213 = por %p211, %p212
      %p214 = scmp.ne.s32.totalorder %s203, %s204
      %p215 = scmp.eq.s32.totalorder %s22, 0
      %p216 = por %p214, %p215
      %p217 = scmp.ne.s32.totalorder %s203, %s204
      %p218 = scmp.eq.s32.totalorder %s23, 1
      %p219 = por %p217, %p218
      %p221 = scmp.ne.s32.totalorder %s204, %s220
      %p222 = scmp.eq.s32.totalorder %s23, 0
      %p223 = por %p221, %p222
      %p224 = scmp.le.s32.totalorder 1, %s17
      %p225 = scmp.lt.s32.totalorder %s17, 3
      %p226 = pnand %p224, %p225
      %p227 = pneg %p226
      // Predicated region
      $region9: #{deep_retina_forward.1} parent=5 // pred_check
        _
      $region10: #{deep_retina_forward.1} parent=5 // pred_check_branch
        %229 = sbr.rel (%p226) target = $region12
      $region11: #{deep_retina_forward.1} parent=5 // pred_region
        %s230 = ssub.s32 %s17, 1
        // Predicated region
        $region13: #{deep_retina_forward.1} parent=11 // pred_check
          %p231 = pneg %p64
        $region14: #{deep_retina_forward.1} parent=11 // pred_check_branch
          %233 = sbr.rel (%p231) target = $region16
        $region15: #{deep_retina_forward.1} parent=11 // pred_region
          _
        $region16: #{deep_retina_forward.1} parent=11 // pred_fallthru
          _
        // Predicated region
        $region17: #{deep_retina_forward.1} parent=11 // pred_check
          %p234 = pneg %p85
        $region18: #{deep_retina_forward.1} parent=11 // pred_check_branch
          %236 = sbr.rel (%p234) target = $region20
        $region19: #{deep_retina_forward.1} parent=11 // pred_region
          _
        $region20: #{deep_retina_forward.1} parent=11 // pred_fallthru
          _
        // Predicated region
        $region21: #{deep_retina_forward.1} parent=11 // pred_check
          %p237 = pneg %p106
        $region22: #{deep_retina_forward.1} parent=11 // pred_check_branch
          %239 = sbr.rel (%p237) target = $region24
        $region23: #{deep_retina_forward.1} parent=11 // pred_region
          _
        $region24: #{deep_retina_forward.1} parent=11 // pred_fallthru
          _
        // Predicated region
        $region25: #{deep_retina_forward.1} parent=11 // pred_check
          %p240 = pneg %p127
        $region26: #{deep_retina_forward.1} parent=11 // pred_check_branch
          %242 = sbr.rel (%p240) target = $region28
        $region27: #{deep_retina_forward.1} parent=11 // pred_region
          _
        $region28: #{deep_retina_forward.1} parent=11 // pred_fallthru
          _
        // Predicated region
        $region29: #{deep_retina_forward.1} parent=11 // pred_check
          %p243 = pneg %p148
        $region30: #{deep_retina_forward.1} parent=11 // pred_check_branch
          %245 = sbr.rel (%p243) target = $region32
        $region31: #{deep_retina_forward.1} parent=11 // pred_region
          _
        $region32: #{deep_retina_forward.1} parent=11 // pred_fallthru
          _
        // Predicated region
        $region33: #{deep_retina_forward.1} parent=11 // pred_check
          %p246 = pneg %p169
        $region34: #{deep_retina_forward.1} parent=11 // pred_check_branch
          %248 = sbr.rel (%p246) target = $region36
        $region35: #{deep_retina_forward.1} parent=11 // pred_region
          _
        $region36: #{deep_retina_forward.1} parent=11 // pred_fallthru
          _
        // Predicated region
        $region37: #{deep_retina_forward.1} parent=11 // pred_check
          %p249 = pneg %p190
        $region38: #{deep_retina_forward.1} parent=11 // pred_check_branch
          %251 = sbr.rel (%p249) target = $region40
        $region39: #{deep_retina_forward.1} parent=11 // pred_region
          _
        $region40: #{deep_retina_forward.1} parent=11 // pred_fallthru
          _
      $region12: #{deep_retina_forward.1} parent=5 // pred_fallthru
        _
      %p252 = scmp.lt.s32.totalorder %s17, 2
      // Predicated region
      $region41: #{deep_retina_forward.1} parent=5 // pred_check
        %p253 = pneg %p252
      $region42: #{deep_retina_forward.1} parent=5 // pred_check_branch
        %255 = sbr.rel (%p253) target = $region44
      $region43: #{deep_retina_forward.1} parent=5 // pred_region
        // Predicated region
        $region45: #{deep_retina_forward.1} parent=43 // pred_check
          %p256 = pneg %p37
        $region46: #{deep_retina_forward.1} parent=43 // pred_check_branch
          %258 = sbr.rel (%p256) target = $region48
        $region47: #{deep_retina_forward.1} parent=43 // pred_region
          %p259 = scmp.lt.s32.totalorder %s17, 1
          %s260 = scalar_select %p259, %s17, 1
          %s261 = smul.addr %s260, 88
          %s262 = smul.addr %s261, 4
          %s263 = scalar_lea.vmem %s0, %s262
        $region48: #{deep_retina_forward.1} parent=43 // pred_fallthru
          _
      $region44: #{deep_retina_forward.1} parent=5 // pred_fallthru
        _
      %p264 = scmp.le.s32.totalorder 1, %s17
      %p265 = scmp.lt.s32.totalorder %s17, 3
      %p266 = pnand %p264, %p265
      %p267 = pneg %p266
      // Predicated region
      $region49: #{deep_retina_forward.1} parent=5 // pred_check
        _
      $region50: #{deep_retina_forward.1} parent=5 // pred_check_branch
        %269 = sbr.rel (%p266) target = $region52
      $region51: #{deep_retina_forward.1} parent=5 // pred_region
        %s270 = ssub.s32 %s17, 1
        %p271 = scmp.lt.s32.totalorder %s22, 1
        %s272 = scalar_select %p271, %s22, 1
        %s273 = smul.addr %s272, 88
        %s274 = smul.addr %s273, 4
        %s275 = scalar_lea.vmem %s0, %s274
        %p276 = pneg %p43
        %p277 = pneg %p40
        %p278 = pneg %p64
        %p279 = pneg %p61
        %p280 = pneg %p85
        %p281 = pneg %p82
        %p282 = pneg %p106
        %p283 = pneg %p103
        %p284 = pneg %p127
        %p285 = pneg %p124
        %p286 = pneg %p148
        %p287 = pneg %p145
        %p288 = pneg %p169
        %p289 = pneg %p166
        %p290 = pneg %p190
        %p291 = pneg %p187
        %p292 = pneg %p216
        %p293 = pneg %p213
        %s294 = sand.u32 %s203, 1
        %s295 = scalar_lea.sflag [#allocation3], %s294
        %s296 = sand.u32 %s203, 1
        %s297 = scalar_lea.vmem [#allocation2], %s296
        %p298 = scmp.lt.s32.totalorder %s22, 1
        %s299 = scalar_select %p298, %s22, 1
        %s300 = smul.addr %s299, 88
        %s301 = smul.addr %s300, 4
        %s302 = scalar_lea.vmem %s0, %s301
        %v304 = vld [vmem:[%s302] sm:$0xff]
        %v305 = vld [vmem:[%s302 + $0x8] sm:$0xff]
        %v306 = vld [vmem:[%s302 + $0x10] sm:$0xff]
        %v307 = vld [vmem:[%s302 + $0x18] sm:$0xff]
        %v308 = vld [vmem:[%s302 + $0x20] sm:$0xff]
        %v309 = vld [vmem:[%s302 + $0x28] sm:$0xff]
        %v310 = vld [vmem:[%s302 + $0x30] sm:$0xff]
        %v311 = vld [vmem:[%s302 + $0x38] sm:$0xff]
        %v312 = vld [vmem:[%s302 + $0x40] sm:$0xff]
        %v313 = vld [vmem:[%s302 + $0x48] sm:$0xff]
        %v314 = vld [vmem:[%s302 + $0x50] sm:$0xff]
        %v315 = vld [vmem:[%s302 + $0x58] sm:$0xff]
        %v316 = vld [vmem:[%s302 + $0x60] sm:$0xff]
        %v317 = vld [vmem:[%s302 + $0x68] sm:$0xff]
        %v318 = vld [vmem:[%s302 + $0x70] sm:$0xff]
        %v319 = vld [vmem:[%s302 + $0x78] sm:$0xff]
        %v320 = vld [vmem:[%s302 + $0x80] sm:$0xff]
        %v321 = vld [vmem:[%s302 + $0x88] sm:$0xff]
        %v322 = vld [vmem:[%s302 + $0x90] sm:$0xff]
        %v323 = vld [vmem:[%s302 + $0x98] sm:$0xff]
        %v324 = vld [vmem:[%s302 + $0xa0] sm:$0xff]
        %v325 = vld [vmem:[%s302 + $0xa8] sm:$0xff]
        %v326 = vld [vmem:[%s302 + $0xb0] sm:$0xff]
        %v327 = vld [vmem:[%s302 + $0xb8] sm:$0xff]
        %v328 = vld [vmem:[%s302 + $0xc0] sm:$0xff]
        %v329 = vld [vmem:[%s302 + $0xc8] sm:$0xff]
        %v330 = vld [vmem:[%s302 + $0xd0] sm:$0xff]
        %v331 = vld [vmem:[%s302 + $0xd8] sm:$0xff]
        %v332 = vld [vmem:[%s302 + $0xe0] sm:$0xff]
        %v333 = vld [vmem:[%s302 + $0xe8] sm:$0xff]
        %v334 = vld [vmem:[%s302 + $0xf0] sm:$0xff]
        %v335 = vld [vmem:[%s302 + $0xf8] sm:$0xff]
        %v336 = vld [vmem:[%s302 + $0x100] sm:$0xff]
        %v337 = vld [vmem:[%s302 + $0x108] sm:$0xff]
        %v338 = vld [vmem:[%s302 + $0x110] sm:$0xff]
        %v339 = vld [vmem:[%s302 + $0x118] sm:$0xff]
        %v340 = vld [vmem:[%s302 + $0x120] sm:$0xff]
        %v341 = vld [vmem:[%s302 + $0x128] sm:$0xff]
        %v342 = vld [vmem:[%s302 + $0x130] sm:$0xff]
        %v343 = vld [vmem:[%s302 + $0x138] sm:$0xff]
        %v344 = vld [vmem:[%s302 + $0x140] sm:$0x11]
        %v345 = vld [vmem:[%s302 + $0x148] sm:$0x11]
        %v346 = vld [vmem:[%s302 + $0x150] sm:$0x11]
        %v347 = vld [vmem:[%s302 + $0x158] sm:$0x11]
        %v348 = vld [vmem:[%s1] sm:$0xf]
        %v349 = vld [vmem:[%s1 + $0x4] sm:$0xf]
        %v350 = vld [vmem:[%s1 + $0x8] sm:$0xf]
        %v351 = vld [vmem:[%s1 + $0xc] sm:$0xf]
        %v352 = vld [vmem:[%s1 + $0x10] sm:$0xf]
        %v353 = vld [vmem:[%s1 + $0x14] sm:$0xf]
        %v354 = vld [vmem:[%s1 + $0x18] sm:$0xf]
        %v355 = vld [vmem:[%s1 + $0x1c] sm:$0xf]
        %v356 = vld [vmem:[%s1 + $0x20] sm:$0xf]
        %v357 = vld [vmem:[%s1 + $0x24] sm:$0xf]
        %v358 = vld [vmem:[%s1 + $0x28] sm:$0xf]
        %v359 = vld [vmem:[%s1 + $0x2c] sm:$0xf]
        %v360 = vld [vmem:[%s1 + $0x30] sm:$0xf]
        %v361 = vld [vmem:[%s1 + $0x34] sm:$0xf]
        %v362 = vld [vmem:[%s1 + $0x38] sm:$0xf]
        %v363 = vld [vmem:[%s1 + $0x3c] sm:$0xf]
        %v364 = vld [vmem:[%s1 + $0x40] sm:$0xf]
        %v365 = vld [vmem:[%s1 + $0x44] sm:$0xf]
        %v366 = vld [vmem:[%s1 + $0x48] sm:$0xf]
        %v367 = vld [vmem:[%s1 + $0x4c] sm:$0xf]
        %v368 = vld [vmem:[%s1 + $0x50] sm:$0xf]
        %v369 = vld [vmem:[%s1 + $0x54] sm:$0xf]
        %v370 = vld [vmem:[%s1 + $0x58] sm:$0xf]
        %v371 = vld [vmem:[%s1 + $0x5c] sm:$0xf]
        %v372 = vld [vmem:[%s1 + $0x60] sm:$0xf]
        %v373 = vld [vmem:[%s1 + $0x64] sm:$0xf]
        %v374 = vld [vmem:[%s1 + $0x68] sm:$0xf]
        %v375 = vld [vmem:[%s1 + $0x6c] sm:$0xf]
        %v376 = vld [vmem:[%s1 + $0x70] sm:$0xf]
        %v377 = vld [vmem:[%s1 + $0x74] sm:$0xf]
        %v378 = vld [vmem:[%s1 + $0x78] sm:$0xf]
        %v379 = vld [vmem:[%s1 + $0x7c] sm:$0xf]
        %v380 = vld [vmem:[%s1 + $0x80] sm:$0xf]
        %v381 = vld [vmem:[%s1 + $0x84] sm:$0xf]
        %v382 = vld [vmem:[%s1 + $0x88] sm:$0xf]
        %v383 = vld [vmem:[%s1 + $0x8c] sm:$0xf]
        %v384 = vld [vmem:[%s1 + $0x90] sm:$0xf]
        %v385 = vld [vmem:[%s1 + $0x94] sm:$0xf]
        %v386 = vld [vmem:[%s1 + $0x98] sm:$0xf]
        %v387 = vld [vmem:[%s1 + $0x9c] sm:$0xf]
        %v388 = vld [vmem:[%s1 + $0xa0] sm:$0xf]
        %v389 = vld [vmem:[%s1 + $0xa4] sm:$0xf]
        %v390 = vld [vmem:[%s1 + $0xa8] sm:$0xf]
        %v391 = vld [vmem:[%s1 + $0xac] sm:$0xf]
        %v392 = vld [vmem:[%s1 + $0xb0] sm:$0xf]
        %v393 = vld [vmem:[%s1 + $0xb4] sm:$0xf]
        %v394 = vld [vmem:[%s1 + $0xb8] sm:$0xf]
        %v395 = vld [vmem:[%s1 + $0xbc] sm:$0xf]
        %v396 = vld [vmem:[%s1 + $0xc0] sm:$0xf]
        %v397 = vld [vmem:[%s1 + $0xc4] sm:$0xf]
        %v398 = vld [vmem:[%s1 + $0xc8] sm:$0xf]
        %v399 = vld [vmem:[%s1 + $0xcc] sm:$0xf]
        %v400 = vld [vmem:[%s1 + $0xd0] sm:$0xf]
        %v401 = vld [vmem:[%s1 + $0xd4] sm:$0xf]
        %v402 = vld [vmem:[%s1 + $0xd8] sm:$0xf]
        %v403 = vld [vmem:[%s1 + $0xdc] sm:$0xf]
        %v404 = vld [vmem:[%s1 + $0xe0] sm:$0xf]
        %v405 = vld [vmem:[%s1 + $0xe4] sm:$0xf]
        %v406 = vld [vmem:[%s1 + $0xe8] sm:$0xf]
        %v407 = vld [vmem:[%s1 + $0xec] sm:$0xf]
        %v408 = vld [vmem:[%s1 + $0xf0] sm:$0xf]
        %v409 = vld [vmem:[%s1 + $0xf4] sm:$0xf]
        %v410 = vld [vmem:[%s1 + $0xf8] sm:$0xf]
        %v411 = vld [vmem:[%s1 + $0xfc] sm:$0xf]
        %v412 = vld [vmem:[%s1 + $0x100] sm:$0xf]
        %v413 = vld [vmem:[%s1 + $0x104] sm:$0xf]
        %v414 = vld [vmem:[%s1 + $0x108] sm:$0xf]
        %v415 = vld [vmem:[%s1 + $0x10c] sm:$0xf]
        %v416 = vld [vmem:[%s1 + $0x110] sm:$0xf]
        %v417 = vld [vmem:[%s1 + $0x114] sm:$0xf]
        %v418 = vld [vmem:[%s1 + $0x118] sm:$0xf]
        %v419 = vld [vmem:[%s1 + $0x11c] sm:$0xf]
        %v420 = vld [vmem:[%s1 + $0x120] sm:$0xf]
        %v421 = vld [vmem:[%s1 + $0x124] sm:$0xf]
        %v422 = vld [vmem:[%s1 + $0x128] sm:$0xf]
        %v423 = vld [vmem:[%s1 + $0x12c] sm:$0xf]
        %v424 = vld [vmem:[%s1 + $0x130] sm:$0xf]
        %v425 = vld [vmem:[%s1 + $0x134] sm:$0xf]
        %v426 = vld [vmem:[%s1 + $0x138] sm:$0xf]
        %v427 = vld [vmem:[%s1 + $0x13c] sm:$0xf]
        %v428 = vld [vmem:[%s1 + $0x140] sm:$0xf]
        %v429 = vld [vmem:[%s1 + $0x144] sm:$0xf]
        %v430 = vld [vmem:[%s1 + $0x148] sm:$0xf]
        %v431 = vld [vmem:[%s1 + $0x14c] sm:$0xf]
        %v432 = vld [vmem:[%s1 + $0x150] sm:$0xf]
        %v433 = vld [vmem:[%s1 + $0x154] sm:$0xf]
        %v434 = vld [vmem:[%s1 + $0x158] sm:$0xf]
        %v435 = vld [vmem:[%s1 + $0x15c] sm:$0xf]
        %v436 = vld [vmem:[%s1 + $0x160] sm:$0xf]
        %v437 = vld [vmem:[%s1 + $0x164] sm:$0xf]
        %v438 = vld [vmem:[%s1 + $0x168] sm:$0xf]
        %v439 = vld [vmem:[%s1 + $0x16c] sm:$0xf]
        %v440 = vld [vmem:[%s1 + $0x170] sm:$0xf]
        %v441 = vld [vmem:[%s1 + $0x174] sm:$0xf]
        %v442 = vld [vmem:[%s1 + $0x178] sm:$0xf]
        %v443 = vld [vmem:[%s1 + $0x17c] sm:$0xf]
        %v444 = vld [vmem:[%s1 + $0x180] sm:$0xf]
        %v445 = vld [vmem:[%s1 + $0x184] sm:$0xf]
        %v446 = vld [vmem:[%s1 + $0x188] sm:$0xf]
        %v447 = vld [vmem:[%s1 + $0x18c] sm:$0xf]
        %v448 = vld [vmem:[%s1 + $0x190] sm:$0xf]
        %v449 = vld [vmem:[%s1 + $0x194] sm:$0xf]
        %v450 = vld [vmem:[%s1 + $0x198] sm:$0xf]
        %v451 = vld [vmem:[%s1 + $0x19c] sm:$0xf]
        %v452 = vld [vmem:[%s1 + $0x1a0] sm:$0xf]
        %v453 = vld [vmem:[%s1 + $0x1a4] sm:$0xf]
        %v454 = vld [vmem:[%s1 + $0x1a8] sm:$0xf]
        %v455 = vld [vmem:[%s1 + $0x1ac] sm:$0xf]
        %v456 = vld [vmem:[%s1 + $0x1b0] sm:$0xf]
        %v457 = vld [vmem:[%s1 + $0x1b4] sm:$0xf]
        %v458 = vld [vmem:[%s1 + $0x1b8] sm:$0xf]
        %v459 = vld [vmem:[%s1 + $0x1bc] sm:$0xf]
        %v460 = vld [vmem:[%s1 + $0x1c0] sm:$0x3]
        %v461 = vld [vmem:[%s2] sm:$0x1]
        %v463 = vlaneseq
        %v464 = vshrl.u32 %v463, 7
        %v465 = vsub.s32 0, %v464
        %v466 = vrot.slane %v461, %v465
        %v512 = vunpack.c.l.b16 %v304
        %v513 = vunpack.c.h.b16 %v304
        %v514 = vunpack.c.l.b16 %v305
        %v515 = vunpack.c.h.b16 %v305
        %v516 = vunpack.c.l.b16 %v306
        %v517 = vunpack.c.h.b16 %v306
        %v518 = vunpack.c.l.b16 %v307
        %v519 = vunpack.c.h.b16 %v307
        %v520 = vunpack.c.l.b16 %v308
        %v521 = vunpack.c.h.b16 %v308
        %v522 = vunpack.c.l.b16 %v309
        %v523 = vunpack.c.h.b16 %v309
        %v524 = vunpack.c.l.b16 %v310
        %v525 = vunpack.c.h.b16 %v310
        %v526 = vunpack.c.l.b16 %v311
        %v527 = vunpack.c.h.b16 %v311
        %v528 = vunpack.c.l.b16 %v312
        %v529 = vunpack.c.h.b16 %v312
        %v530 = vunpack.c.l.b16 %v313
        %v531 = vunpack.c.h.b16 %v313
        %v532 = vunpack.c.l.b16 %v314
        %v533 = vunpack.c.h.b16 %v314
        %v534 = vunpack.c.l.b16 %v315
        %v535 = vunpack.c.h.b16 %v315
        %v536 = vunpack.c.l.b16 %v316
        %v537 = vunpack.c.h.b16 %v316
        %v538 = vunpack.c.l.b16 %v317
        %v539 = vunpack.c.h.b16 %v317
        %v540 = vunpack.c.l.b16 %v318
        %v541 = vunpack.c.h.b16 %v318
        %v542 = vunpack.c.l.b16 %v319
        %v543 = vunpack.c.h.b16 %v319
        %v544 = vunpack.c.l.b16 %v320
        %v545 = vunpack.c.h.b16 %v320
        %v546 = vunpack.c.l.b16 %v321
        %v547 = vunpack.c.h.b16 %v321
        %v548 = vunpack.c.l.b16 %v322
        %v549 = vunpack.c.h.b16 %v322
        %v550 = vunpack.c.l.b16 %v323
        %v551 = vunpack.c.h.b16 %v323
        %v552 = vunpack.c.l.b16 %v324
        %v553 = vunpack.c.h.b16 %v324
        %v554 = vunpack.c.l.b16 %v325
        %v555 = vunpack.c.h.b16 %v325
        %v556 = vunpack.c.l.b16 %v326
        %v557 = vunpack.c.h.b16 %v326
        %v558 = vunpack.c.l.b16 %v327
        %v559 = vunpack.c.h.b16 %v327
        %v560 = vunpack.c.l.b16 %v328
        %v561 = vunpack.c.h.b16 %v328
        %v562 = vunpack.c.l.b16 %v329
        %v563 = vunpack.c.h.b16 %v329
        %v564 = vunpack.c.l.b16 %v330
        %v565 = vunpack.c.h.b16 %v330
        %v566 = vunpack.c.l.b16 %v331
        %v567 = vunpack.c.h.b16 %v331
        %v568 = vunpack.c.l.b16 %v332
        %v569 = vunpack.c.h.b16 %v332
        %v570 = vunpack.c.l.b16 %v333
        %v571 = vunpack.c.h.b16 %v333
        %v572 = vunpack.c.l.b16 %v334
        %v573 = vunpack.c.h.b16 %v334
        %v574 = vunpack.c.l.b16 %v335
        %v575 = vunpack.c.h.b16 %v335
        %v576 = vunpack.c.l.b16 %v336
        %v577 = vunpack.c.h.b16 %v336
        %v578 = vunpack.c.l.b16 %v337
        %v579 = vunpack.c.h.b16 %v337
        %v580 = vunpack.c.l.b16 %v338
        %v581 = vunpack.c.h.b16 %v338
        %v582 = vunpack.c.l.b16 %v339
        %v583 = vunpack.c.h.b16 %v339
        %v584 = vunpack.c.l.b16 %v340
        %v585 = vunpack.c.h.b16 %v340
        %v586 = vunpack.c.l.b16 %v341
        %v587 = vunpack.c.h.b16 %v341
        %v588 = vunpack.c.l.b16 %v342
        %v589 = vunpack.c.h.b16 %v342
        %v590 = vunpack.c.l.b16 %v343
        %v591 = vunpack.c.h.b16 %v343
        %v592 = vunpack.c.l.b16 %v344
        %v593 = vunpack.c.h.b16 %v344
        %v594 = vunpack.c.l.b16 %v345
        %v595 = vunpack.c.h.b16 %v345
        %v596 = vunpack.c.l.b16 %v346
        %v597 = vunpack.c.h.b16 %v346
        %v598 = vunpack.c.l.b16 %v347
        %v599 = vunpack.c.h.b16 %v347
        %v600 = vpack.c.b16 %v520, %v512
        %v601 = vpack.c.b16 %v521, %v513
        %v602 = vpack.c.b16 %v522, %v514
        %v603 = vpack.c.b16 %v523, %v515
        %v604 = vpack.c.b16 %v524, %v516
        %v605 = vpack.c.b16 %v525, %v517
        %v606 = vpack.c.b16 %v526, %v518
        %v607 = vpack.c.b16 %v527, %v519
        %v608 = vpack.c.b16 %v536, %v528
        %v609 = vpack.c.b16 %v537, %v529
        %v610 = vpack.c.b16 %v538, %v530
        %v611 = vpack.c.b16 %v539, %v531
        %v612 = vpack.c.b16 %v540, %v532
        %v613 = vpack.c.b16 %v541, %v533
        %v614 = vpack.c.b16 %v542, %v534
        %v615 = vpack.c.b16 %v543, %v535
        %v616 = vpack.c.b16 %v552, %v544
        %v617 = vpack.c.b16 %v553, %v545
        %v618 = vpack.c.b16 %v554, %v546
        %v619 = vpack.c.b16 %v555, %v547
        %v620 = vpack.c.b16 %v556, %v548
        %v621 = vpack.c.b16 %v557, %v549
        %v622 = vpack.c.b16 %v558, %v550
        %v623 = vpack.c.b16 %v559, %v551
        %v624 = vpack.c.b16 %v568, %v560
        %v625 = vpack.c.b16 %v569, %v561
        %v626 = vpack.c.b16 %v570, %v562
        %v627 = vpack.c.b16 %v571, %v563
        %v628 = vpack.c.b16 %v572, %v564
        %v629 = vpack.c.b16 %v573, %v565
        %v630 = vpack.c.b16 %v574, %v566
        %v631 = vpack.c.b16 %v575, %v567
        %v632 = vpack.c.b16 %v584, %v576
        %v633 = vpack.c.b16 %v585, %v577
        %v634 = vpack.c.b16 %v586, %v578
        %v635 = vpack.c.b16 %v587, %v579
        %v636 = vpack.c.b16 %v588, %v580
        %v637 = vpack.c.b16 %v589, %v581
        %v638 = vpack.c.b16 %v590, %v582
        %v639 = vpack.c.b16 %v591, %v583
        %v640 = vpack.c.b16 %v592, %v592
        %v641 = vpack.c.b16 %v593, %v593
        %v642 = vpack.c.b16 %v594, %v594
        %v643 = vpack.c.b16 %v595, %v595
        %v644 = vpack.c.b16 %v596, %v596
        %v645 = vpack.c.b16 %v597, %v597
        %v646 = vpack.c.b16 %v598, %v598
        %v647 = vpack.c.b16 %v599, %v599
        %v803 = vunpack.c.l.b16 %v348
        %v804 = vunpack.c.l.b16 %v349
        %v805 = vunpack.c.l.b16 %v350
        %v806 = vunpack.c.l.b16 %v351
        %v807 = vunpack.c.l.b16 %v352
        %v808 = vunpack.c.l.b16 %v353
        %v809 = vunpack.c.l.b16 %v354
        %v810 = vunpack.c.l.b16 %v355
        %v811 = vunpack.c.l.b16 %v356
        %v812 = vunpack.c.l.b16 %v357
        %v813 = vunpack.c.l.b16 %v358
        %v814 = vunpack.c.l.b16 %v359
        %v815 = vunpack.c.l.b16 %v360
        %v816 = vunpack.c.l.b16 %v361
        %v817 = vunpack.c.l.b16 %v362
        %v818 = vunpack.c.l.b16 %v363
        %v819 = vunpack.c.l.b16 %v364
        %v820 = vunpack.c.l.b16 %v365
        %v821 = vunpack.c.l.b16 %v366
        %v822 = vunpack.c.l.b16 %v367
        %v823 = vunpack.c.l.b16 %v368
        %v824 = vunpack.c.l.b16 %v369
        %v825 = vunpack.c.l.b16 %v370
        %v826 = vunpack.c.l.b16 %v371
        %v827 = vunpack.c.l.b16 %v372
        %v828 = vunpack.c.l.b16 %v373
        %v829 = vunpack.c.l.b16 %v374
        %v830 = vunpack.c.l.b16 %v375
        %v831 = vunpack.c.l.b16 %v376
        %v832 = vunpack.c.l.b16 %v377
        %v833 = vunpack.c.l.b16 %v378
        %v834 = vunpack.c.l.b16 %v379
        %v835 = vunpack.c.l.b16 %v380
        %v836 = vunpack.c.l.b16 %v381
        %v837 = vunpack.c.l.b16 %v382
        %v838 = vunpack.c.l.b16 %v383
        %v839 = vunpack.c.l.b16 %v384
        %v840 = vunpack.c.l.b16 %v385
        %v841 = vunpack.c.l.b16 %v386
        %v842 = vunpack.c.l.b16 %v387
        %v843 = vunpack.c.l.b16 %v388
        %v844 = vunpack.c.l.b16 %v389
        %v845 = vunpack.c.l.b16 %v390
        %v846 = vunpack.c.l.b16 %v391
        %v847 = vunpack.c.l.b16 %v392
        %v848 = vunpack.c.l.b16 %v393
        %v849 = vunpack.c.l.b16 %v394
        %v850 = vunpack.c.l.b16 %v395
        %v851 = vunpack.c.l.b16 %v396
        %v852 = vunpack.c.l.b16 %v397
        %v853 = vunpack.c.l.b16 %v398
        %v854 = vunpack.c.l.b16 %v399
        %v855 = vunpack.c.l.b16 %v400
        %v856 = vunpack.c.l.b16 %v401
        %v857 = vunpack.c.l.b16 %v402
        %v858 = vunpack.c.l.b16 %v403
        %v859 = vunpack.c.l.b16 %v404
        %v860 = vunpack.c.l.b16 %v405
        %v861 = vunpack.c.l.b16 %v406
        %v862 = vunpack.c.l.b16 %v407
        %v863 = vunpack.c.l.b16 %v408
        %v864 = vunpack.c.l.b16 %v409
        %v865 = vunpack.c.l.b16 %v410
        %v866 = vunpack.c.l.b16 %v411
        %v867 = vunpack.c.l.b16 %v412
        %v868 = vunpack.c.l.b16 %v413
        %v869 = vunpack.c.l.b16 %v414
        %v870 = vunpack.c.l.b16 %v415
        %v871 = vunpack.c.l.b16 %v416
        %v872 = vunpack.c.l.b16 %v417
        %v873 = vunpack.c.l.b16 %v418
        %v874 = vunpack.c.l.b16 %v419
        %v875 = vunpack.c.l.b16 %v420
        %v876 = vunpack.c.l.b16 %v421
        %v877 = vunpack.c.l.b16 %v422
        %v878 = vunpack.c.l.b16 %v423
        %v879 = vunpack.c.l.b16 %v424
        %v880 = vunpack.c.l.b16 %v425
        %v881 = vunpack.c.l.b16 %v426
        %v882 = vunpack.c.l.b16 %v427
        %v883 = vunpack.c.l.b16 %v428
        %v884 = vunpack.c.l.b16 %v429
        %v885 = vunpack.c.l.b16 %v430
        %v886 = vunpack.c.l.b16 %v431
        %v887 = vunpack.c.l.b16 %v432
        %v888 = vunpack.c.l.b16 %v433
        %v889 = vunpack.c.l.b16 %v434
        %v890 = vunpack.c.l.b16 %v435
        %v891 = vunpack.c.l.b16 %v436
        %v892 = vunpack.c.l.b16 %v437
        %v893 = vunpack.c.l.b16 %v438
        %v894 = vunpack.c.l.b16 %v439
        %v895 = vunpack.c.l.b16 %v440
        %v896 = vunpack.c.l.b16 %v441
        %v897 = vunpack.c.l.b16 %v442
        %v898 = vunpack.c.l.b16 %v443
        %v899 = vunpack.c.l.b16 %v444
        %v900 = vunpack.c.l.b16 %v445
        %v901 = vunpack.c.l.b16 %v446
        %v902 = vunpack.c.l.b16 %v447
        %v903 = vunpack.c.l.b16 %v448
        %v904 = vunpack.c.l.b16 %v449
        %v905 = vunpack.c.l.b16 %v450
        %v906 = vunpack.c.l.b16 %v451
        %v907 = vunpack.c.l.b16 %v452
        %v908 = vunpack.c.l.b16 %v453
        %v909 = vunpack.c.l.b16 %v454
        %v910 = vunpack.c.l.b16 %v455
        %v911 = vunpack.c.l.b16 %v456
        %v912 = vunpack.c.l.b16 %v457
        %v913 = vunpack.c.l.b16 %v458
        %v914 = vunpack.c.l.b16 %v459
        %v915 = vunpack.c.l.b16 %v460
        %v916 = vpack.c.b16 %v804, %v803
        %v917 = vpack.c.b16 %v806, %v805
        %v918 = vpack.c.b16 %v808, %v807
        %v919 = vpack.c.b16 %v810, %v809
        %v920 = vpack.c.b16 %v812, %v811
        %v921 = vpack.c.b16 %v814, %v813
        %v922 = vpack.c.b16 %v816, %v815
        %v923 = vpack.c.b16 %v818, %v817
        %v924 = vpack.c.b16 %v820, %v819
        %v925 = vpack.c.b16 %v822, %v821
        %v926 = vpack.c.b16 %v824, %v823
        %v927 = vpack.c.b16 %v826, %v825
        %v928 = vpack.c.b16 %v828, %v827
        %v929 = vpack.c.b16 %v830, %v829
        %v930 = vpack.c.b16 %v832, %v831
        %v931 = vpack.c.b16 %v834, %v833
        %v932 = vpack.c.b16 %v836, %v835
        %v933 = vpack.c.b16 %v838, %v837
        %v934 = vpack.c.b16 %v840, %v839
        %v935 = vpack.c.b16 %v842, %v841
        %v936 = vpack.c.b16 %v844, %v843
        %v937 = vpack.c.b16 %v846, %v845
        %v938 = vpack.c.b16 %v848, %v847
        %v939 = vpack.c.b16 %v850, %v849
        %v940 = vpack.c.b16 %v852, %v851
        %v941 = vpack.c.b16 %v854, %v853
        %v942 = vpack.c.b16 %v856, %v855
        %v943 = vpack.c.b16 %v858, %v857
        %v944 = vpack.c.b16 %v860, %v859
        %v945 = vpack.c.b16 %v862, %v861
        %v946 = vpack.c.b16 %v864, %v863
        %v947 = vpack.c.b16 %v866, %v865
        %v948 = vpack.c.b16 %v868, %v867
        %v949 = vpack.c.b16 %v870, %v869
        %v950 = vpack.c.b16 %v872, %v871
        %v951 = vpack.c.b16 %v874, %v873
        %v952 = vpack.c.b16 %v876, %v875
        %v953 = vpack.c.b16 %v878, %v877
        %v954 = vpack.c.b16 %v880, %v879
        %v955 = vpack.c.b16 %v882, %v881
        %v956 = vpack.c.b16 %v884, %v883
        %v957 = vpack.c.b16 %v886, %v885
        %v958 = vpack.c.b16 %v888, %v887
        %v959 = vpack.c.b16 %v890, %v889
        %v960 = vpack.c.b16 %v892, %v891
        %v961 = vpack.c.b16 %v894, %v893
        %v962 = vpack.c.b16 %v896, %v895
        %v963 = vpack.c.b16 %v898, %v897
        %v964 = vpack.c.b16 %v900, %v899
        %v965 = vpack.c.b16 %v902, %v901
        %v966 = vpack.c.b16 %v904, %v903
        %v967 = vpack.c.b16 %v906, %v905
        %v968 = vpack.c.b16 %v908, %v907
        %v969 = vpack.c.b16 %v910, %v909
        %v970 = vpack.c.b16 %v912, %v911
        %v971 = vpack.c.b16 %v914, %v913
        %v972 = vpack.c.b16 %v915, %v915
        %vm1029 = vcmask 31744
        %v1031 = vsel %vm1029, %v607, 0
        %v1034 = vsel %vm1029, %v615, 0
        %v1037 = vsel %vm1029, %v623, 0
        %v1040 = vsel %vm1029, %v631, 0
        %v1043 = vsel %vm1029, %v639, 0
        %v1046 = vsel %vm1029, %v647, 0
        %vm1048 = vcmask 1041408
        %v1050 = vsel %vm1048, %v972, 0
        %1052 = vmatprep.subr.bf16.mxu0 0
        %1053 = vmatpush1.bf16.msra.mxu0 %v916
        %1054 = vmatprep.subr.bf16.mxu0 0
        %1055 = vmatpush1.bf16.msra.mxu0 %v917
        %1056 = vmatprep.subr.bf16.mxu0 0
        %1057 = vmatpush1.bf16.msra.mxu0 %v918
        %1058 = vmatprep.subr.bf16.mxu0 0
        %1059 = vmatpush1.bf16.msra.mxu0 %v919
        %1060 = vmatprep.subr.bf16.mxu0 0
        %1061 = vmatpush1.bf16.msra.mxu0 %v920
        %1062 = vmatprep.subr.bf16.mxu0 0
        %1063 = vmatpush1.bf16.msra.mxu0 %v921
        %1064 = vmatprep.subr.bf16.mxu0 0
        %1065 = vmatpush1.bf16.msra.mxu0 %v922
        %1066 = vmatprep.subr.bf16.mxu0 0
        %1067 = vmatpush1.bf16.msra.mxu0 %v923
        %1068 = vmatprep.subr.bf16.mxu0 0
        %1069 = vmatpush1.bf16.msra.mxu0 %v924
        %1070 = vmatprep.subr.bf16.mxu0 0
        %1071 = vmatpush1.bf16.msra.mxu0 %v925
        %1072 = vmatprep.subr.bf16.mxu0 0
        %1073 = vmatpush1.bf16.msra.mxu0 %v926
        %1074 = vmatprep.subr.bf16.mxu0 0
        %1075 = vmatpush1.bf16.msra.mxu0 %v927
        %1076 = vmatprep.subr.bf16.mxu0 0
        %1077 = vmatpush1.bf16.msra.mxu0 %v928
        %1078 = vmatprep.subr.bf16.mxu0 0
        %1079 = vmatpush1.bf16.msra.mxu0 %v929
        %1080 = vmatprep.subr.bf16.mxu0 0
        %1081 = vmatpush1.bf16.msra.mxu0 %v930
        %1082 = vmatprep.subr.bf16.mxu0 0
        %1083 = vmatpush1.bf16.msra.mxu0 %v931
        %1084 = vmatprep.mubr.bf16.mxu0 %v601
        %1085 = vmatmul.mubr.bf16.gmra.mrb[0].mxu0 %v600
        %v1086 = vpop.f32.mrb[0].mxu0
        %v1087 = vadd.f32 %v466, %v1086
        %v1088 = vpop.f32.mrb[0].mxu0
        %v1089 = vpop.f32.mrb[0].mxu0
        %v1090 = vadd.f32 %v466, %v1089
        %v1091 = vpop.f32.mrb[0].mxu0
        %1092 = vmatprep.mubr.bf16.mxu0 %v609
        %1093 = vmatmul.mubr.bf16.gmra.mrb[0].mxu0 %v608
        %v1094 = vpop.f32.mrb[0].mxu0
        %v1095 = vadd.f32 %v466, %v1094
        %v1096 = vpop.f32.mrb[0].mxu0
        %v1097 = vpop.f32.mrb[0].mxu0
        %v1098 = vadd.f32 %v466, %v1097
        %v1099 = vpop.f32.mrb[0].mxu0
        %1100 = vmatprep.mubr.bf16.mxu0 %v617
        %1101 = vmatmul.mubr.bf16.gmra.mrb[0].mxu0 %v616
        %v1102 = vpop.f32.mrb[0].mxu0
        %v1103 = vadd.f32 %v466, %v1102
        %v1104 = vpop.f32.mrb[0].mxu0
        %v1105 = vpop.f32.mrb[0].mxu0
        %v1106 = vadd.f32 %v466, %v1105
        %v1107 = vpop.f32.mrb[0].mxu0
        %1108 = vmatprep.mubr.bf16.mxu0 %v625
        %1109 = vmatmul.mubr.bf16.gmra.mrb[0].mxu0 %v624
        %v1110 = vpop.f32.mrb[0].mxu0
        %v1111 = vadd.f32 %v466, %v1110
        %v1112 = vpop.f32.mrb[0].mxu0
        %v1113 = vpop.f32.mrb[0].mxu0
        %v1114 = vadd.f32 %v466, %v1113
        %v1115 = vpop.f32.mrb[0].mxu0
        %1116 = vmatprep.mubr.bf16.mxu0 %v633
        %1117 = vmatmul.mubr.bf16.gmra.mrb[0].mxu0 %v632
        %v1118 = vpop.f32.mrb[0].mxu0
        %v1119 = vadd.f32 %v466, %v1118
        %v1120 = vpop.f32.mrb[0].mxu0
        %v1121 = vpop.f32.mrb[0].mxu0
        %v1122 = vadd.f32 %v466, %v1121
        %v1123 = vpop.f32.mrb[0].mxu0
        %1124 = vmatprep.mubr.bf16.mxu0 %v641
        %1125 = vmatmul.mubr.bf16.gmra.mrb[0].mxu0 %v640
        %v1126 = vpop.f32.mrb[0].mxu0
        %v1127 = vadd.f32 %v466, %v1126
        %v1128 = vpop.f32.mrb[0].mxu0
        %v1129 = vpop.f32.mrb[0].mxu0
        %v1130 = vpop.f32.mrb[0].mxu0
        %1131 = vdwg.mxu0
        %1132 = vmatprep.subr.bf16.mxu0 0
        %1133 = vmatpush1.bf16.msra.mxu0 %v932
        %1134 = vmatprep.subr.bf16.mxu0 0
        %1135 = vmatpush1.bf16.msra.mxu0 %v933
        %1136 = vmatprep.subr.bf16.mxu0 0
        %1137 = vmatpush1.bf16.msra.mxu0 %v934
        %1138 = vmatprep.subr.bf16.mxu0 0
        %1139 = vmatpush1.bf16.msra.mxu0 %v935
        %1140 = vmatprep.subr.bf16.mxu0 0
        %1141 = vmatpush1.bf16.msra.mxu0 %v936
        %1142 = vmatprep.subr.bf16.mxu0 0
        %1143 = vmatpush1.bf16.msra.mxu0 %v937
        %1144 = vmatprep.subr.bf16.mxu0 0
        %1145 = vmatpush1.bf16.msra.mxu0 %v938
        %1146 = vmatprep.subr.bf16.mxu0 0
        %1147 = vmatpush1.bf16.msra.mxu0 %v939
        %1148 = vmatprep.subr.bf16.mxu0 0
        %1149 = vmatpush1.bf16.msra.mxu0 %v940
        %1150 = vmatprep.subr.bf16.mxu0 0
        %1151 = vmatpush1.bf16.msra.mxu0 %v941
        %1152 = vmatprep.subr.bf16.mxu0 0
        %1153 = vmatpush1.bf16.msra.mxu0 %v942
        %1154 = vmatprep.subr.bf16.mxu0 0
        %1155 = vmatpush1.bf16.msra.mxu0 %v943
        %1156 = vmatprep.subr.bf16.mxu0 0
        %1157 = vmatpush1.bf16.msra.mxu0 %v944
        %1158 = vmatprep.subr.bf16.mxu0 0
        %1159 = vmatpush1.bf16.msra.mxu0 %v945
        %1160 = vmatprep.subr.bf16.mxu0 0
        %1161 = vmatpush1.bf16.msra.mxu0 %v946
        %1162 = vmatprep.subr.bf16.mxu0 0
        %1163 = vmatpush1.bf16.msra.mxu0 %v947
        %1164 = vmatprep.mubr.bf16.mxu0 %v603
        %1165 = vmatmul.mubr.bf16.gmra.mrb[0].mxu0 %v602
        %v1166 = vpop.f32.mrb[0].mxu0
        %v1167 = vadd.f32 %v1087, %v1166
        %v1168 = vpop.f32.mrb[0].mxu0
        %v1169 = vpop.f32.mrb[0].mxu0
        %v1170 = vadd.f32 %v1090, %v1169
        %v1171 = vpop.f32.mrb[0].mxu0
        %1172 = vmatprep.mubr.bf16.mxu0 %v611
        %1173 = vmatmul.mubr.bf16.gmra.mrb[0].mxu0 %v610
        %v1174 = vpop.f32.mrb[0].mxu0
        %v1175 = vadd.f32 %v1095, %v1174
        %v1176 = vpop.f32.mrb[0].mxu0
        %v1177 = vpop.f32.mrb[0].mxu0
        %v1178 = vadd.f32 %v1098, %v1177
        %v1179 = vpop.f32.mrb[0].mxu0
        %1180 = vmatprep.mubr.bf16.mxu0 %v619
        %1181 = vmatmul.mubr.bf16.gmra.mrb[0].mxu0 %v618
        %v1182 = vpop.f32.mrb[0].mxu0
        %v1183 = vadd.f32 %v1103, %v1182
        %v1184 = vpop.f32.mrb[0].mxu0
        %v1185 = vpop.f32.mrb[0].mxu0
        %v1186 = vadd.f32 %v1106, %v1185
        %v1187 = vpop.f32.mrb[0].mxu0
        %1188 = vmatprep.mubr.bf16.mxu0 %v627
        %1189 = vmatmul.mubr.bf16.gmra.mrb[0].mxu0 %v626
        %v1190 = vpop.f32.mrb[0].mxu0
        %v1191 = vadd.f32 %v1111, %v1190
        %v1192 = vpop.f32.mrb[0].mxu0
        %v1193 = vpop.f32.mrb[0].mxu0
        %v1194 = vadd.f32 %v1114, %v1193
        %v1195 = vpop.f32.mrb[0].mxu0
        %1196 = vmatprep.mubr.bf16.mxu0 %v635
        %1197 = vmatmul.mubr.bf16.gmra.mrb[0].mxu0 %v634
        %v1198 = vpop.f32.mrb[0].mxu0
        %v1199 = vadd.f32 %v1119, %v1198
        %v1200 = vpop.f32.mrb[0].mxu0
        %v1201 = vpop.f32.mrb[0].mxu0
        %v1202 = vadd.f32 %v1122, %v1201
        %v1203 = vpop.f32.mrb[0].mxu0
        %1204 = vmatprep.mubr.bf16.mxu0 %v643
        %1205 = vmatmul.mubr.bf16.gmra.mrb[0].mxu0 %v642
        %v1206 = vpop.f32.mrb[0].mxu0
        %v1207 = vadd.f32 %v1127, %v1206
        %v1208 = vpop.f32.mrb[0].mxu0
        %v1209 = vpop.f32.mrb[0].mxu0
        %v1210 = vpop.f32.mrb[0].mxu0
        %1211 = vdwg.mxu0
        %1212 = vmatprep.subr.bf16.mxu0 0
        %1213 = vmatpush1.bf16.msra.mxu0 %v948
        %1214 = vmatprep.subr.bf16.mxu0 0
        %1215 = vmatpush1.bf16.msra.mxu0 %v949
        %1216 = vmatprep.subr.bf16.mxu0 0
        %1217 = vmatpush1.bf16.msra.mxu0 %v950
        %1218 = vmatprep.subr.bf16.mxu0 0
        %1219 = vmatpush1.bf16.msra.mxu0 %v951
        %1220 = vmatprep.subr.bf16.mxu0 0
        %1221 = vmatpush1.bf16.msra.mxu0 %v952
        %1222 = vmatprep.subr.bf16.mxu0 0
        %1223 = vmatpush1.bf16.msra.mxu0 %v953
        %1224 = vmatprep.subr.bf16.mxu0 0
        %1225 = vmatpush1.bf16.msra.mxu0 %v954
        %1226 = vmatprep.subr.bf16.mxu0 0
        %1227 = vmatpush1.bf16.msra.mxu0 %v955
        %1228 = vmatprep.subr.bf16.mxu0 0
        %1229 = vmatpush1.bf16.msra.mxu0 %v956
        %1230 = vmatprep.subr.bf16.mxu0 0
        %1231 = vmatpush1.bf16.msra.mxu0 %v957
        %1232 = vmatprep.subr.bf16.mxu0 0
        %1233 = vmatpush1.bf16.msra.mxu0 %v958
        %1234 = vmatprep.subr.bf16.mxu0 0
        %1235 = vmatpush1.bf16.msra.mxu0 %v959
        %1236 = vmatprep.subr.bf16.mxu0 0
        %1237 = vmatpush1.bf16.msra.mxu0 %v960
        %1238 = vmatprep.subr.bf16.mxu0 0
        %1239 = vmatpush1.bf16.msra.mxu0 %v961
        %1240 = vmatprep.subr.bf16.mxu0 0
        %1241 = vmatpush1.bf16.msra.mxu0 %v962
        %1242 = vmatprep.subr.bf16.mxu0 0
        %1243 = vmatpush1.bf16.msra.mxu0 %v963
        %1244 = vmatprep.mubr.bf16.mxu0 %v605
        %1245 = vmatmul.mubr.bf16.gmra.mrb[0].mxu0 %v604
        %v1246 = vpop.f32.mrb[0].mxu0
        %v1247 = vadd.f32 %v1167, %v1246
        %v1248 = vpop.f32.mrb[0].mxu0
        %v1249 = vpop.f32.mrb[0].mxu0
        %v1250 = vadd.f32 %v1170, %v1249
        %v1251 = vpop.f32.mrb[0].mxu0
        %1252 = vmatprep.mubr.bf16.mxu0 %v613
        %1253 = vmatmul.mubr.bf16.gmra.mrb[0].mxu0 %v612
        %v1254 = vpop.f32.mrb[0].mxu0
        %v1255 = vadd.f32 %v1175, %v1254
        %v1256 = vpop.f32.mrb[0].mxu0
        %v1257 = vpop.f32.mrb[0].mxu0
        %v1258 = vadd.f32 %v1178, %v1257
        %v1259 = vpop.f32.mrb[0].mxu0
        %1260 = vmatprep.mubr.bf16.mxu0 %v621
        %1261 = vmatmul.mubr.bf16.gmra.mrb[0].mxu0 %v620
        %v1262 = vpop.f32.mrb[0].mxu0
        %v1263 = vadd.f32 %v1183, %v1262
        %v1264 = vpop.f32.mrb[0].mxu0
        %v1265 = vpop.f32.mrb[0].mxu0
        %v1266 = vadd.f32 %v1186, %v1265
        %v1267 = vpop.f32.mrb[0].mxu0
        %1268 = vmatprep.mubr.bf16.mxu0 %v629
        %1269 = vmatmul.mubr.bf16.gmra.mrb[0].mxu0 %v628
        %v1270 = vpop.f32.mrb[0].mxu0
        %v1271 = vadd.f32 %v1191, %v1270
        %v1272 = vpop.f32.mrb[0].mxu0
        %v1273 = vpop.f32.mrb[0].mxu0
        %v1274 = vadd.f32 %v1194, %v1273
        %v1275 = vpop.f32.mrb[0].mxu0
        %1276 = vmatprep.mubr.bf16.mxu0 %v637
        %1277 = vmatmul.mubr.bf16.gmra.mrb[0].mxu0 %v636
        %v1278 = vpop.f32.mrb[0].mxu0
        %v1279 = vadd.f32 %v1199, %v1278
        %v1280 = vpop.f32.mrb[0].mxu0
        %v1281 = vpop.f32.mrb[0].mxu0
        %v1282 = vadd.f32 %v1202, %v1281
        %v1283 = vpop.f32.mrb[0].mxu0
        %1284 = vmatprep.mubr.bf16.mxu0 %v645
        %1285 = vmatmul.mubr.bf16.gmra.mrb[0].mxu0 %v644
        %v1286 = vpop.f32.mrb[0].mxu0
        %v1287 = vadd.f32 %v1207, %v1286
        %v1288 = vpop.f32.mrb[0].mxu0
        %v1289 = vpop.f32.mrb[0].mxu0
        %v1290 = vpop.f32.mrb[0].mxu0
        %1291 = vdwg.mxu0
        %1292 = vmatprep.subr.bf16.mxu0 0
        %1293 = vmatpush1.bf16.msra.mxu0 %v964
        %1294 = vmatprep.subr.bf16.mxu0 0
        %1295 = vmatpush1.bf16.msra.mxu0 %v965
        %1296 = vmatprep.subr.bf16.mxu0 0
        %1297 = vmatpush1.bf16.msra.mxu0 %v966
        %1298 = vmatprep.subr.bf16.mxu0 0
        %1299 = vmatpush1.bf16.msra.mxu0 %v967
        %1300 = vmatprep.subr.bf16.mxu0 0
        %1301 = vmatpush1.bf16.msra.mxu0 %v968
        %1302 = vmatprep.subr.bf16.mxu0 0
        %1303 = vmatpush1.bf16.msra.mxu0 %v969
        %1304 = vmatprep.subr.bf16.mxu0 0
        %1305 = vmatpush1.bf16.msra.mxu0 %v970
        %1306 = vmatprep.subr.bf16.mxu0 0
        %1307 = vmatpush1.bf16.msra.mxu0 %v971
        %1308 = vmatprep.subr.bf16.mxu0 0
        %1309 = vmatpush1.bf16.msra.mxu0 %v1050
        %1310 = vmatprep.subr.bf16.mxu0 0
        %1311 = vmatpush1.bf16.msra.mxu0 0
        %1312 = vmatprep.subr.bf16.mxu0 0
        %1313 = vmatpush1.bf16.msra.mxu0 0
        %1314 = vmatprep.subr.bf16.mxu0 0
        %1315 = vmatpush1.bf16.msra.mxu0 0
        %1316 = vmatprep.subr.bf16.mxu0 0
        %1317 = vmatpush1.bf16.msra.mxu0 0
        %1318 = vmatprep.subr.bf16.mxu0 0
        %1319 = vmatpush1.bf16.msra.mxu0 0
        %1320 = vmatprep.subr.bf16.mxu0 0
        %1321 = vmatpush1.bf16.msra.mxu0 0
        %1322 = vmatprep.subr.bf16.mxu0 0
        %1323 = vmatpush1.bf16.msra.mxu0 0
        %1324 = vmatprep.mubr.bf16.mxu0 %v1031
        %1325 = vmatmul.mubr.bf16.gmra.mrb[0].mxu0 %v606
        %v1326 = vpop.f32.mrb[0].mxu0
        %v1327 = vadd.f32 %v1247, %v1326
        %v1328 = vpop.f32.mrb[0].mxu0
        %v1329 = vpop.f32.mrb[0].mxu0
        %v1330 = vadd.f32 %v1250, %v1329
        %v1331 = vpop.f32.mrb[0].mxu0
        %1332 = vmatprep.mubr.bf16.mxu0 %v1034
        %1333 = vmatmul.mubr.bf16.gmra.mrb[0].mxu0 %v614
        %v1334 = vpop.f32.mrb[0].mxu0
        %v1335 = vadd.f32 %v1255, %v1334
        %v1336 = vpop.f32.mrb[0].mxu0
        %v1337 = vpop.f32.mrb[0].mxu0
        %v1338 = vadd.f32 %v1258, %v1337
        %v1339 = vpop.f32.mrb[0].mxu0
        %1340 = vmatprep.mubr.bf16.mxu0 %v1037
        %1341 = vmatmul.mubr.bf16.gmra.mrb[0].mxu0 %v622
        %v1342 = vpop.f32.mrb[0].mxu0
        %v1343 = vadd.f32 %v1263, %v1342
        %v1344 = vpop.f32.mrb[0].mxu0
        %v1345 = vpop.f32.mrb[0].mxu0
        %v1346 = vadd.f32 %v1266, %v1345
        %v1347 = vpop.f32.mrb[0].mxu0
        %1348 = vmatprep.mubr.bf16.mxu0 %v1040
        %1349 = vmatmul.mubr.bf16.gmra.mrb[0].mxu0 %v630
        %v1350 = vpop.f32.mrb[0].mxu0
        %v1351 = vadd.f32 %v1271, %v1350
        %v1352 = vpop.f32.mrb[0].mxu0
        %v1353 = vpop.f32.mrb[0].mxu0
        %v1354 = vadd.f32 %v1274, %v1353
        %v1355 = vpop.f32.mrb[0].mxu0
        %1356 = vmatprep.mubr.bf16.mxu0 %v1043
        %1357 = vmatmul.mubr.bf16.gmra.mrb[0].mxu0 %v638
        %v1358 = vpop.f32.mrb[0].mxu0
        %v1359 = vadd.f32 %v1279, %v1358
        %v1360 = vpop.f32.mrb[0].mxu0
        %v1361 = vpop.f32.mrb[0].mxu0
        %v1362 = vadd.f32 %v1282, %v1361
        %v1363 = vpop.f32.mrb[0].mxu0
        %1364 = vmatprep.mubr.bf16.mxu0 %v1046
        %1365 = vmatmul.mubr.bf16.gmra.mrb[0].mxu0 %v646
        %v1366 = vpop.f32.mrb[0].mxu0
        %v1367 = vadd.f32 %v1287, %v1366
        %v1368 = vpop.f32.mrb[0].mxu0
        %v1369 = vpop.f32.mrb[0].mxu0
        %v1370 = vpop.f32.mrb[0].mxu0
        %1371 = vdwg.mxu0
        %v1372 = vmax.f32 %v1327, 0.0
        %v1373 = vmax.f32 %v1330, 0.0
        %v1374 = vmax.f32 %v1335, 0.0
        %v1375 = vmax.f32 %v1338, 0.0
        %v1376 = vmax.f32 %v1343, 0.0
        %v1377 = vmax.f32 %v1346, 0.0
        %v1378 = vmax.f32 %v1351, 0.0
        %v1379 = vmax.f32 %v1354, 0.0
        %v1380 = vmax.f32 %v1359, 0.0
        %v1381 = vmax.f32 %v1362, 0.0
        %v1382 = vmax.f32 %v1367, 0.0
        %v1383 = vld [vmem:[%s3] sm:$0xff]
        %v1384 = vld [vmem:[%s3 + $0x8] sm:$0xff]
        %v1385 = vld [vmem:[%s3 + $0x10] sm:$0xff]
        %v1386 = vld [vmem:[%s3 + $0x18] sm:$0xff]
        %v1387 = vld [vmem:[%s3 + $0x20] sm:$0xff]
        %v1388 = vld [vmem:[%s3 + $0x28] sm:$0xff]
        %v1389 = vld [vmem:[%s3 + $0x30] sm:$0xff]
        %v1390 = vld [vmem:[%s3 + $0x38] sm:$0xff]
        %v1391 = vld [vmem:[%s3 + $0x40] sm:$0xff]
        %v1392 = vld [vmem:[%s3 + $0x48] sm:$0xff]
        %v1393 = vld [vmem:[%s3 + $0x50] sm:$0x1]
        %v1394 = vmul.f32 %v1372, %v1383
        %v1395 = vmul.f32 %v1373, %v1384
        %v1396 = vmul.f32 %v1374, %v1385
        %v1397 = vmul.f32 %v1375, %v1386
        %v1398 = vmul.f32 %v1376, %v1387
        %v1399 = vmul.f32 %v1377, %v1388
        %v1400 = vmul.f32 %v1378, %v1389
        %v1401 = vmul.f32 %v1379, %v1390
        %v1402 = vmul.f32 %v1380, %v1391
        %v1403 = vmul.f32 %v1381, %v1392
        %v1404 = vmul.f32 %v1382, %v1393
        %v1405 = vadd.f32 %v1394, %v1395
        %v1406 = vadd.f32 %v1405, %v1396
        %v1407 = vadd.f32 %v1406, %v1397
        %v1408 = vadd.f32 %v1407, %v1398
        %v1409 = vadd.f32 %v1408, %v1399
        %v1410 = vadd.f32 %v1409, %v1400
        %v1411 = vadd.f32 %v1410, %v1401
        %v1412 = vadd.f32 %v1411, %v1402
        %v1413 = vadd.f32 %v1412, %v1403
        %vm1414 = vcmask 1040384
        %v1415 = vsel %vm1414, %v1404, 0.0
        %v1416 = vadd.f32 %v1413, %v1415
        %v1417 = vrot.slane %v1416, 4
        %v1418 = vadd.f32 %v1416, %v1417
        %v1419 = vrot.slane %v1418, 2
        %v1420 = vadd.f32 %v1418, %v1419
        %v1421 = vrot.slane %v1420, 1
        %v1422 = vadd.f32 %v1420, %v1421
        %v1423 = vld [vmem:[%s4] sm:$0xff]
        %v1424 = vld [vmem:[%s4 + $0x8] sm:$0xff]
        %v1425 = vld [vmem:[%s4 + $0x10] sm:$0xff]
        %v1426 = vld [vmem:[%s4 + $0x18] sm:$0xff]
        %v1427 = vld [vmem:[%s4 + $0x20] sm:$0xff]
        %v1428 = vld [vmem:[%s4 + $0x28] sm:$0xff]
        %v1429 = vld [vmem:[%s4 + $0x30] sm:$0xff]
        %v1430 = vld [vmem:[%s4 + $0x38] sm:$0xff]
        %v1431 = vld [vmem:[%s4 + $0x40] sm:$0xff]
        %v1432 = vld [vmem:[%s4 + $0x48] sm:$0xff]
        %v1433 = vld [vmem:[%s4 + $0x50] sm:$0xff]
        %v1434 = vld [vmem:[%s4 + $0x58] sm:$0xff]
        %v1435 = vld [vmem:[%s4 + $0x60] sm:$0xff]
        %v1436 = vld [vmem:[%s4 + $0x68] sm:$0xff]
        %v1437 = vld [vmem:[%s4 + $0x70] sm:$0xff]
        %v1438 = vld [vmem:[%s4 + $0x78] sm:$0xff]
        %v1439 = vld [vmem:[%s5] sm:$0x1]
        %1440 = vmatprep.subr.mxu0 0.0
        %1441 = vmatpush1.msra.mxu0 %v1423
        %1442 = vmatprep.subr.mxu0 0.0
        %1443 = vmatpush1.msra.mxu0 %v1424
        %1444 = vmatprep.subr.mxu0 0.0
        %1445 = vmatpush1.msra.mxu0 %v1425
        %1446 = vmatprep.subr.mxu0 0.0
        %1447 = vmatpush1.msra.mxu0 %v1426
        %1448 = vmatprep.subr.mxu0 0.0
        %1449 = vmatpush1.msra.mxu0 %v1427
        %1450 = vmatprep.subr.mxu0 0.0
        %1451 = vmatpush1.msra.mxu0 %v1428
        %1452 = vmatprep.subr.mxu0 0.0
        %1453 = vmatpush1.msra.mxu0 %v1429
        %1454 = vmatprep.subr.mxu0 0.0
        %1455 = vmatpush1.msra.mxu0 %v1430
        %1456 = vmatprep.subr.mxu0 0.0
        %1457 = vmatpush1.msra.mxu0 %v1431
        %1458 = vmatprep.subr.mxu0 0.0
        %1459 = vmatpush1.msra.mxu0 %v1432
        %1460 = vmatprep.subr.mxu0 0.0
        %1461 = vmatpush1.msra.mxu0 %v1433
        %1462 = vmatprep.subr.mxu0 0.0
        %1463 = vmatpush1.msra.mxu0 %v1434
        %1464 = vmatprep.subr.mxu0 0.0
        %1465 = vmatpush1.msra.mxu0 %v1435
        %1466 = vmatprep.subr.mxu0 0.0
        %1467 = vmatpush1.msra.mxu0 %v1436
        %1468 = vmatprep.subr.mxu0 0.0
        %1469 = vmatpush1.msra.mxu0 %v1437
        %1470 = vmatprep.subr.mxu0 0.0
        %1471 = vmatpush1.msra.mxu0 %v1438
        %1472 = vmatprep.subr.mxu0 0.0
        %1473 = vmatpush1.msra.mxu0 0.0
        %1474 = vmatprep.subr.mxu0 0.0
        %1475 = vmatpush1.msra.mxu0 0.0
        %1476 = vmatprep.subr.mxu0 0.0
        %1477 = vmatpush1.msra.mxu0 0.0
        %1478 = vmatprep.subr.mxu0 0.0
        %1479 = vmatpush1.msra.mxu0 0.0
        %1480 = vmatprep.subr.mxu0 0.0
        %1481 = vmatpush1.msra.mxu0 0.0
        %1482 = vmatprep.subr.mxu0 0.0
        %1483 = vmatpush1.msra.mxu0 0.0
        %1484 = vmatprep.subr.mxu0 0.0
        %1485 = vmatpush1.msra.mxu0 0.0
        %1486 = vmatprep.subr.mxu0 0.0
        %1487 = vmatpush1.msra.mxu0 0.0
        %1488 = vmatprep.subr.mxu0 0.0
        %1489 = vmatpush1.msra.mxu0 0.0
        %1490 = vmatprep.subr.mxu0 0.0
        %1491 = vmatpush1.msra.mxu0 0.0
        %1492 = vmatprep.subr.mxu0 0.0
        %1493 = vmatpush1.msra.mxu0 0.0
        %1494 = vmatprep.subr.mxu0 0.0
        %1495 = vmatpush1.msra.mxu0 0.0
        %1496 = vmatprep.subr.mxu0 0.0
        %1497 = vmatpush1.msra.mxu0 0.0
        %1498 = vmatprep.subr.mxu0 0.0
        %1499 = vmatpush1.msra.mxu0 0.0
        %1500 = vmatprep.subr.mxu0 0.0
        %1501 = vmatpush1.msra.mxu0 0.0
        %1502 = vmatprep.subr.mxu0 0.0
        %1503 = vmatpush1.msra.mxu0 0.0
        %1504 = vmatprep.mubr.f32.mxu0 0.0
        %1505 = vmatmul.mubr.f32.gmra.mrb[0].mxu0 %v1422
        %v1506 = vpop.f32.mrb[0].mxu0
        %v1507 = vadd.f32 %v1439, %v1506
        %v1508 = vpop.f32.mrb[0].mxu0
        %1509 = vdwg.mxu0
        %v1510 = vmax.f32 %v1507, 0.0
        %v1511 = vpack.c.bf16 %v1510, %v1510
        %v1512 = vld [vmem:[%s6] sm:$0xf]
        %v1513 = vld [vmem:[%s7] sm:$0x1]
        %vm1514 = vcmask 64512
        %v1516 = vsel %vm1514, %v1511, 0
        %vm1518 = vcmask 1043456
        %v1520 = vsel %vm1518, %v1512, 0
        %1522 = vmatprep.subr.bf16.mxu0 0
        %1523 = vmatpush1.bf16.msra.mxu0 %v1520
        %1524 = vmatprep.subr.bf16.mxu0 0
        %1525 = vmatpush1.bf16.msra.mxu0 0
        %1526 = vmatprep.subr.bf16.mxu0 0
        %1527 = vmatpush1.bf16.msra.mxu0 0
        %1528 = vmatprep.subr.bf16.mxu0 0
        %1529 = vmatpush1.bf16.msra.mxu0 0
        %1530 = vmatprep.subr.bf16.mxu0 0
        %1531 = vmatpush1.bf16.msra.mxu0 0
        %1532 = vmatprep.subr.bf16.mxu0 0
        %1533 = vmatpush1.bf16.msra.mxu0 0
        %1534 = vmatprep.subr.bf16.mxu0 0
        %1535 = vmatpush1.bf16.msra.mxu0 0
        %1536 = vmatprep.subr.bf16.mxu0 0
        %1537 = vmatpush1.bf16.msra.mxu0 0
        %1538 = vmatprep.subr.bf16.mxu0 0
        %1539 = vmatpush1.bf16.msra.mxu0 0
        %1540 = vmatprep.subr.bf16.mxu0 0
        %1541 = vmatpush1.bf16.msra.mxu0 0
        %1542 = vmatprep.subr.bf16.mxu0 0
        %1543 = vmatpush1.bf16.msra.mxu0 0
        %1544 = vmatprep.subr.bf16.mxu0 0
        %1545 = vmatpush1.bf16.msra.mxu0 0
        %1546 = vmatprep.subr.bf16.mxu0 0
        %1547 = vmatpush1.bf16.msra.mxu0 0
        %1548 = vmatprep.subr.bf16.mxu0 0
        %1549 = vmatpush1.bf16.msra.mxu0 0
        %1550 = vmatprep.subr.bf16.mxu0 0
        %1551 = vmatpush1.bf16.msra.mxu0 0
        %1552 = vmatprep.subr.bf16.mxu0 0
        %1553 = vmatpush1.bf16.msra.mxu0 0
        %1554 = vmatprep.mubr.bf16.mxu0 0
        %1555 = vmatmul.mubr.bf16.gmra.mrb[0].mxu0 %v1516
        %v1556 = vpop.f32.mrb[0].mxu0
        %v1557 = vadd.f32 %v1513, %v1556
        %v1558 = vpop.f32.mrb[0].mxu0
        %v1559 = vpop.f32.mrb[0].mxu0
        %v1560 = vpop.f32.mrb[0].mxu0
        %1561 = vdwg.mxu0
        %vm1562 = vcmp.gt.f32.partialorder %v1557, 20.0
        %v1563 = vmin.f32 %v1557, 20.0
        %v1564 = vmul.f32 %v1563, 1.442695
        %v1565 = vpow.pop %v1564
        %v1566 = vadd.f32 %v1565, 1.0
        %v1567 = vlog2.pop %v1566
        %v1568 = vmul.f32 %v1567, 0.6931472
        %v1569 = vsel %vm1562, %v1557, %v1568
        %vm1570 = vcmask 40960
        %1571 = vst.msk [vmem:[%s297] sm:$0x1] %vm1570, %v1569
        %s1572 = sand.u32 %s203, 1
        %s1573 = scalar_lea.sflag [#allocation3], %s1572
        %s1574 = sand.u32 %s203, 1
        %s1575 = scalar_lea.vmem [#allocation2], %s1574
        // Predicated region
        $region53: #{deep_retina_forward.1} parent=51 // pred_check
          %p1576 = pneg %p213
        $region54: #{deep_retina_forward.1} parent=51 // pred_check_branch
          %1578 = sbr.rel (%p1576) target = $region56
        $region55: #{deep_retina_forward.1} parent=51 // pred_region
          %s1580 = ssub.s32 16, 16
          %1581 = vsyncadd %s1573, %s1580
          %s1582 = smul.addr %s22, 16
          %s1583 = scalar_lea.hbm %s8, %s1582
          %s1585 = sshll.u32 %s1575, 4
          %s1586 = int_to_ptr.vmem [resolvable:$true] %s1585
          %1588 = dma.vmem_to_hbm [thread:$0]  %s1586, 16, %s1583, %s1573
        $region56: #{deep_retina_forward.1} parent=51 // pred_fallthru
          _
      $region52: #{deep_retina_forward.1} parent=5 // pred_fallthru
        _
      %p1589 = scmp.le.s32.totalorder 2, %s17
      // Predicated region
      $region57: #{deep_retina_forward.1} parent=5 // pred_check
        %p1590 = pneg %p1589
      $region58: #{deep_retina_forward.1} parent=5 // pred_check_branch
        %1592 = sbr.rel (%p1590) target = $region60
      $region59: #{deep_retina_forward.1} parent=5 // pred_region
        %s1593 = ssub.s32 %s17, 2
        // Predicated region
        $region61: #{deep_retina_forward.1} parent=59 // pred_check
          %p1594 = pneg %p219
        $region62: #{deep_retina_forward.1} parent=59 // pred_check_branch
          %1596 = sbr.rel (%p1594) target = $region64
        $region63: #{deep_retina_forward.1} parent=59 // pred_region
          %s1597 = sand.u32 %s204, 1
          %s1598 = scalar_lea.sflag [#allocation3], %s1597
          %s1599 = sand.u32 %s204, 1
          %s1600 = scalar_lea.vmem [#allocation2], %s1599
          %1601 = dma.done %s1598, 16
        $region64: #{deep_retina_forward.1} parent=59 // pred_fallthru
          _
      $region60: #{deep_retina_forward.1} parent=5 // pred_fallthru
        _
    $region6: #{deep_retina_forward.1} parent=1 // loop_footer
      %s21 = sadd.s32 1, %s17
    $region7: #{deep_retina_forward.1} parent=1 // loop_footer_branch
      %16 = sbr.rel target = $region3
    $region8: #{deep_retina_forward.1} parent=1 // loop_exit
      _
    %1602 = vsyncpa [#allocation3], 1
    %s1603 = scalar_lea.sflag [#allocation3], 1
    %1604 = vsyncpa %s1603, 1

</llo_original>
